<compile_context>
chip_gen: v5e
topology: v5e:2x2
jax: 0.10.0
libtpu: 0.0.40
codegen_flags: <defaults>
</compile_context>

<pallas_src>
import math

import jax
import jax.numpy as jnp
from jax import lax
from jax.experimental import pallas as pl
from jax.experimental.pallas import tpu as pltpu


MXU_DTYPE = jnp.bfloat16   # MXU-native operand dtype; accumulation stays f32.


# ----------------------------- kernel helpers -----------------------------

def _layer_norm(x, gamma, beta):
    # PyTorch LayerNorm in the reference: unbiased=False variance, eps=1e-10.
    mean = jnp.mean(x, axis=-1, keepdims=True)
    var = jnp.mean((x - mean) ** 2, axis=-1, keepdims=True)
    return gamma * ((x - mean) * lax.rsqrt(var + 1e-10)) + beta


def encoder_stack_kernel(x_ref, bias_ref,
                         wqkv_ref, bqkv_ref, wo_ref, bo_ref,
                         g1_ref, be1_ref,
                         w1_ref, b1_ref, w2_ref, b2_ref,
                         g2_ref, be2_ref,
                         out_ref):
    """One grid step == one EncoderLayer; activations carried in out_ref."""
    l = pl.program_id(0)

    @pl.when(l == 0)
    def _():
        out_ref[...] = x_ref[...]            # embedded tokens, f32 (B, S, D)

    x3 = out_ref[...]                        # (B, S, D) f32, resident across layers
    B, S, D = x3.shape
    H3 = wqkv_ref.shape[1]                   # 3 * n_head (q/k/v stacked on head axis)
    H = H3 // 3
    dh = D // H
    G = B * H
    scale = 1.0 / math.sqrt(dh)

    x2 = x3.reshape(B * S, D)                # residual / dense-path view (f32)

    # ---- fused Q/K/V projection (single batched MXU contraction) ----
    xb = x3.astype(MXU_DTYPE)
    xg3 = jnp.broadcast_to(xb[:, None, :, :], (B, H3, S, D)).reshape(B * H3, S, D)
    wg3 = jnp.broadcast_to(wqkv_ref[0][None], (B, H3, D, dh)).reshape(B * H3, D, dh)

    qkv = jnp.einsum('gsd,gde->gse', xg3, wg3,
                     preferred_element_type=jnp.float32)
    qkv = qkv.reshape(B, H3, S, dh) + bqkv_ref[0][None, :, None, :]

    q = qkv[:, 0:H].reshape(G, S, dh).astype(MXU_DTYPE)        # leading-dim slices only
    k = qkv[:, H:2 * H].reshape(G, S, dh).astype(MXU_DTYPE)
    v = qkv[:, 2 * H:3 * H].reshape(G, S, dh).astype(MXU_DTYPE)

    # ---- scaled dot-product attention (head-batched, leading dim G = B*H) ----
    s = jnp.einsum('gqe,gke->gqk', q, k,
                   preferred_element_type=jnp.float32) * scale
    bias = jnp.broadcast_to(bias_ref[...][:, None, None, :],
                            (B, H, 1, S)).reshape(G, 1, S)
    s = s + bias                             # additive mask == masked_fill(-1e9)

    m = jnp.max(s, axis=-1, keepdims=True)   # numerically stable softmax
    p = jnp.exp(s - m)
    denom = jnp.sum(p, axis=-1, keepdims=True)
    p = p * pl.reciprocal(denom, approx=True)

    ctx = jnp.einsum('gqk,gke->gqe', p.astype(MXU_DTYPE), v,
                     preferred_element_type=jnp.float32)          # (G, S, dh)
    wo_g = jnp.broadcast_to(wo_ref[0][None], (B, H, dh, D)).reshape(G, dh, D)
    oh = jnp.einsum('gqe,ged->gqd', ctx.astype(MXU_DTYPE), wo_g,
                    preferred_element_type=jnp.float32)            # (G, S, D)
    attn = jnp.sum(oh.reshape(B, H, S, D), axis=1).reshape(B * S, D) + bo_ref[0]

    # dropout1: identity (eval mode)
    x1 = _layer_norm(attn + x2, g1_ref[0], be1_ref[0])

    # ---- position-wise feed forward ----
    h1 = jnp.dot(x1.astype(MXU_DTYPE), w1_ref[0],
                 preferred_element_type=jnp.float32) + b1_ref[0]
    h1 = jnp.maximum(h1, 0.0)
    # dropout inside FFN + dropout2: identity (eval mode)
    ff = jnp.dot(h1.astype(MXU_DTYPE), w2_ref[0],
                 preferred_element_type=jnp.float32) + b2_ref[0]

    y = _layer_norm(ff + x1, g2_ref[0], be2_ref[0])
    out_ref[...] = y.reshape(B, S, D)        # carried to next layer / final output


# ----------------------------- host wrappers -----------------------------

_PARAM_ORDER = ("wqkv", "bqkv", "wo", "bo", "g1", "be1",
                "w1", "b1", "w2", "b2", "g2", "be2")


def encoder_stack(x, key_bias, stacked):
    B, S, D = x.shape
    L = stacked["wqkv"].shape[0]

    def wspec(arr):
        blk = (1,) + tuple(arr.shape[1:])
        zeros = (0,) * (arr.ndim - 1)
        return pl.BlockSpec(blk, lambda l, _z=zeros: (l,) + _z)

    in_specs = [pl.BlockSpec((B, S, D), lambda l: (0, 0, 0)),   # embedded x
                pl.BlockSpec((B, S), lambda l: (0, 0))]         # additive key bias
    in_specs += [wspec(stacked[name]) for name in _PARAM_ORDER]

    return pl.pallas_call(
        encoder_stack_kernel,
        out_shape=jax.ShapeDtypeStruct((B, S, D), jnp.float32),
        grid=(L,),
        in_specs=in_specs,
        out_specs=pl.BlockSpec((B, S, D), lambda l: (0, 0, 0)),  # resident accumulator
        compiler_params=pltpu.CompilerParams(dimension_semantics=("arbitrary",)),
    )(x, key_bias, *[stacked[name] for name in _PARAM_ORDER])


def sinusoid_table(max_len, d_model):
    pos = jnp.arange(max_len, dtype=jnp.float32)[:, None]
    i2 = jnp.arange(0, d_model, 2, dtype=jnp.float32)
    angle = pos / jnp.power(10000.0, i2 / d_model)
    table = jnp.zeros((max_len, d_model), jnp.float32)
    table = table.at[:, 0::2].set(jnp.sin(angle))
    table = table.at[:, 1::2].set(jnp.cos(angle))
    return table


def encoder_forward(tokens, key_mask, params):
    """key_mask: (B, S), 1.0 = attend to key position, 0.0 = masked.

    Equivalent to torch `score.masked_fill(mask == 0, -1e9)` with a
    key-padding mask broadcast over queries/heads.
    """
    S = tokens.shape[1]
    # TODO(synk): token-embedding gather + sinusoidal table stay as plain-JAX glue
    # (a data-dependent gather has no clean/worthwhile Pallas form at this size).
    x = params["tok_emb"][tokens] + params["pos_table"][:S, :][None, :, :]
    # TransformerEmbedding drop_out: identity (eval mode)
    key_bias = jnp.where(key_mask == 0.0, -1e9, 0.0).astype(jnp.float32)
    return encoder_stack(x, key_bias, params["stacked"])


def init_params(key, n_layers, vocab_size, d_model, max_len, ffn_hidden, n_head):
    D, F, H, L = d_model, ffn_hidden, n_head, n_layers
    dh = D // H
    keys = jax.random.split(key, 1 + L * 6)

    def nrm(k, shape):
        return 0.05 * jax.random.normal(k, shape, jnp.float32)

    wq = jnp.stack([nrm(keys[1 + 6 * i + 0], (D, D)) for i in range(L)])
    wk = jnp.stack([nrm(keys[1 + 6 * i + 1], (D, D)) for i in range(L)])
    wv = jnp.stack([nrm(keys[1 + 6 * i + 2], (D, D)) for i in range(L)])
    wo = jnp.stack([nrm(keys[1 + 6 * i + 3], (D, D)) for i in range(L)])
    w1 = jnp.stack([nrm(keys[1 + 6 * i + 4], (D, F)) for i in range(L)])
    w2 = jnp.stack([nrm(keys[1 + 6 * i + 5], (F, D)) for i in range(L)])

    def head_cols(w):   # (L, D, H*dh) -> head-major (L, H, D, dh)
        return jnp.transpose(w.reshape(L, D, H, dh), (0, 2, 1, 3))

    # Fuse q/k/v along the head axis: (L, 3H, D, dh), MXU dtype.
    wqkv = jnp.concatenate([head_cols(wq), head_cols(wk), head_cols(wv)],
                           axis=1).astype(MXU_DTYPE)

    stacked = {
        "wqkv": wqkv,
        "bqkv": jnp.zeros((L, 3 * H, dh), jnp.float32),
        "wo": wo.reshape(L, H, dh, D).astype(MXU_DTYPE),
        "bo": jnp.zeros((L, 1, D), jnp.float32),
        "g1": jnp.ones((L, 1, D), jnp.float32),
        "be1": jnp.zeros((L, 1, D), jnp.float32),
        "w1": w1.astype(MXU_DTYPE),
        "b1": jnp.zeros((L, 1, F), jnp.float32),
        "w2": w2.astype(MXU_DTYPE),
        "b2": jnp.zeros((L, 1, D), jnp.float32),
        "g2": jnp.ones((L, 1, D), jnp.float32),
        "be2": jnp.zeros((L, 1, D), jnp.float32),
    }
    return {
        "tok_emb": 0.02 * jax.random.normal(keys[0], (vocab_size, D), jnp.float32),
        "pos_table": sinusoid_table(max_len, D),
        "stacked": stacked,
    }


# ---------------------------------- main ----------------------------------

if __name__ == "__main__":
    # Encoder hyper-parameters (small, consistent with the module's forward).
    n_layers, vocab_size, d_model, max_len = 2, 50, 32, 16
    n_head, ffn_hidden = 4, 64
    B, S = 2, 8

    key = jax.random.PRNGKey(0)
    k_par, k_tok = jax.random.split(key)

    params = init_params(k_par, n_layers, vocab_size, d_model, max_len,
                         ffn_hidden, n_head)

    tokens = jax.random.randint(k_tok, (B, S), 0, vocab_size)

    # Key-padding mask: sequence 0 has full length, sequence 1 has length 5.
    lengths = jnp.array([S, 5], dtype=jnp.int32)
    key_mask = (jnp.arange(S)[None, :] < lengths[:, None]).astype(jnp.float32)  # (B, S)

    out = encoder_forward(tokens, key_mask, params)
    out = jax.block_until_ready(out)
    assert out.shape == (B, S, d_model)
    assert bool(jnp.all(jnp.isfinite(out)))
    print("KERNEL_OK")
</pallas_src>

<mosaic_0001>
module attributes {stable_mosaic.version = 11 : i64} {
  func.func @encoder_stack_kernel(%arg0: i32, %arg1: memref<2x8x32xf32, #tpu.memory_space<vmem>>, %arg2: memref<2x8xf32, #tpu.memory_space<vmem>>, %arg3: memref<1x12x32x8xbf16, #tpu.memory_space<vmem>>, %arg4: memref<1x12x8xf32, #tpu.memory_space<vmem>>, %arg5: memref<1x4x8x32xbf16, #tpu.memory_space<vmem>>, %arg6: memref<1x1x32xf32, #tpu.memory_space<vmem>>, %arg7: memref<1x1x32xf32, #tpu.memory_space<vmem>>, %arg8: memref<1x1x32xf32, #tpu.memory_space<vmem>>, %arg9: memref<1x32x64xbf16, #tpu.memory_space<vmem>>, %arg10: memref<1x1x64xf32, #tpu.memory_space<vmem>>, %arg11: memref<1x64x32xbf16, #tpu.memory_space<vmem>>, %arg12: memref<1x1x32xf32, #tpu.memory_space<vmem>>, %arg13: memref<1x1x32xf32, #tpu.memory_space<vmem>>, %arg14: memref<1x1x32xf32, #tpu.memory_space<vmem>>, %arg15: memref<2x8x32xf32, #tpu.memory_space<vmem>>) attributes {dimension_semantics = [#tpu.dimension_semantics<arbitrary>], iteration_bounds = array<i64: 2>, scalar_prefetch = 0 : i64, scratch_operands = 0 : i64, tpu.core_type = #tpu.core_type<tc>, window_params = [{pipeline_mode = #tpu.pipeline_mode<synchronous>, transform_indices = @transform_0, window_bounds = array<i64: 2, 8, 32>}, {pipeline_mode = #tpu.pipeline_mode<synchronous>, transform_indices = @transform_1, window_bounds = array<i64: 2, 8>}, {transform_indices = @transform_2, window_bounds = array<i64: 1, 12, 32, 8>}, {transform_indices = @transform_3, window_bounds = array<i64: 1, 12, 8>}, {transform_indices = @transform_4, window_bounds = array<i64: 1, 4, 8, 32>}, {transform_indices = @transform_5, window_bounds = array<i64: 1, 1, 32>}, {transform_indices = @transform_6, window_bounds = array<i64: 1, 1, 32>}, {transform_indices = @transform_7, window_bounds = array<i64: 1, 1, 32>}, {transform_indices = @transform_8, window_bounds = array<i64: 1, 32, 64>}, {transform_indices = @transform_9, window_bounds = array<i64: 1, 1, 64>}, {transform_indices = @transform_10, window_bounds = array<i64: 1, 64, 32>}, {transform_indices = @transform_11, window_bounds = array<i64: 1, 1, 32>}, {transform_indices = @transform_12, window_bounds = array<i64: 1, 1, 32>}, {transform_indices = @transform_13, window_bounds = array<i64: 1, 1, 32>}, {pipeline_mode = #tpu.pipeline_mode<synchronous>, transform_indices = @transform_14, window_bounds = array<i64: 2, 8, 32>}]} {
    %c0_i32 = arith.constant 0 : i32
    %0 = arith.cmpi eq, %arg0, %c0_i32 : i32
    %1 = arith.extui %0 : i1 to i32
    %c0_i32_0 = arith.constant 0 : i32
    %2 = arith.cmpi ne, %1, %c0_i32_0 : i32
    scf.if %2 {
      %c0_66 = arith.constant 0 : index
      %c0_67 = arith.constant 0 : index
      %c0_68 = arith.constant 0 : index
      %143 = vector.load %arg1[%c0_66, %c0_67, %c0_68] : memref<2x8x32xf32, #tpu.memory_space<vmem>>, vector<2x8x32xf32>
      %c0_69 = arith.constant 0 : index
      %c0_70 = arith.constant 0 : index
      %c0_71 = arith.constant 0 : index
      %144 = vector.load %arg15[%c0_69, %c0_70, %c0_71] : memref<2x8x32xf32, #tpu.memory_space<vmem>>, vector<2x8x32xf32>
      tpu.vector_store %arg15[%c0_69, %c0_70, %c0_71], %143 {strides = array<i32>} : memref<2x8x32xf32, #tpu.memory_space<vmem>>, vector<2x8x32xf32>,
    } else {
    }
    %c0 = arith.constant 0 : index
    %c0_1 = arith.constant 0 : index
    %c0_2 = arith.constant 0 : index
    %3 = vector.load %arg15[%c0, %c0_1, %c0_2] : memref<2x8x32xf32, #tpu.memory_space<vmem>>, vector<2x8x32xf32>
    %4 = vector.shape_cast %3 : vector<2x8x32xf32> to vector<16x32xf32>
    %5 = arith.truncf %3 : vector<2x8x32xf32> to vector<2x8x32xbf16>
    %6 = vector.shape_cast %5 : vector<2x8x32xbf16> to vector<2x1x8x32xbf16>
    %7 = vector.shape_cast %6 : vector<2x1x8x32xbf16> to vector<2x1x8x32xbf16>
    %8 = vector.broadcast %7 : vector<2x1x8x32xbf16> to vector<2x12x8x32xbf16>
    %9 = vector.shape_cast %8 : vector<2x12x8x32xbf16> to vector<24x8x32xbf16>
    %c0_3 = arith.constant 0 : index
    %c0_4 = arith.constant 0 : index
    %c0_5 = arith.constant 0 : index
    %c0_6 = arith.constant 0 : index
    %10 = vector.load %arg3[%c0_3, %c0_4, %c0_5, %c0_6] : memref<1x12x32x8xbf16, #tpu.memory_space<vmem>>, vector<1x12x32x8xbf16>
    %11 = vector.shape_cast %10 : vector<1x12x32x8xbf16> to vector<12x32x8xbf16>
    %12 = vector.shape_cast %11 : vector<12x32x8xbf16> to vector<1x12x32x8xbf16>
    %13 = vector.shape_cast %12 : vector<1x12x32x8xbf16> to vector<1x12x32x8xbf16>
    %14 = vector.broadcast %13 : vector<1x12x32x8xbf16> to vector<2x12x32x8xbf16>
    %15 = vector.shape_cast %14 : vector<2x12x32x8xbf16> to vector<24x32x8xbf16>
    "tpu.trace_start"() <{level = 10 : i32, message = "gsd,gde->gse"}> : () -> ()
    %cst = arith.constant dense<0.000000e+00> : vector<24x8x8xf32>
    %16 = tpu.matmul %9, %15, %cst {dimension_numbers = #tpu.dot_dimension_numbers<[2], [1], [1], [2], [0, 0, 0, 1, 1, 2], [0], [0]>} : vector<24x8x32xbf16>, vector<24x32x8xbf16>, vector<24x8x8xf32> -> vector<24x8x8xf32>
    "tpu.trace_stop"() : () -> ()
    %17 = vector.shape_cast %16 : vector<24x8x8xf32> to vector<2x12x8x8xf32>
    %c0_7 = arith.constant 0 : index
    %c0_8 = arith.constant 0 : index
    %c0_9 = arith.constant 0 : index
    %18 = vector.load %arg4[%c0_7, %c0_8, %c0_9] : memref<1x12x8xf32, #tpu.memory_space<vmem>>, vector<1x12x8xf32>
    %19 = vector.shape_cast %18 : vector<1x12x8xf32> to vector<12x8xf32>
    %20 = vector.shape_cast %19 : vector<12x8xf32> to vector<1x12x1x8xf32>
    %21 = vector.broadcast %20 : vector<1x12x1x8xf32> to vector<2x12x8x8xf32>
    %22 = arith.addf %17, %21 : vector<2x12x8x8xf32>
    %23 = vector.extract_strided_slice %22 {offsets = [0, 0, 0, 0], sizes = [2, 4, 8, 8], strides = [1, 1, 1, 1]} : vector<2x12x8x8xf32> to vector<2x4x8x8xf32>
    %24 = vector.shape_cast %23 : vector<2x4x8x8xf32> to vector<8x8x8xf32>
    %25 = arith.truncf %24 : vector<8x8x8xf32> to vector<8x8x8xbf16>
    %26 = vector.extract_strided_slice %22 {offsets = [0, 4, 0, 0], sizes = [2, 4, 8, 8], strides = [1, 1, 1, 1]} : vector<2x12x8x8xf32> to vector<2x4x8x8xf32>
    %27 = vector.shape_cast %26 : vector<2x4x8x8xf32> to vector<8x8x8xf32>
    %28 = arith.truncf %27 : vector<8x8x8xf32> to vector<8x8x8xbf16>
    %29 = vector.extract_strided_slice %22 {offsets = [0, 8, 0, 0], sizes = [2, 4, 8, 8], strides = [1, 1, 1, 1]} : vector<2x12x8x8xf32> to vector<2x4x8x8xf32>
    %30 = vector.shape_cast %29 : vector<2x4x8x8xf32> to vector<8x8x8xf32>
    %31 = arith.truncf %30 : vector<8x8x8xf32> to vector<8x8x8xbf16>
    "tpu.trace_start"() <{level = 10 : i32, message = "gqe,gke->gqk"}> : () -> ()
    %cst_10 = arith.constant dense<0.000000e+00> : vector<8x8x8xf32>
    %32 = tpu.matmul %25, %28, %cst_10 {dimension_numbers = #tpu.dot_dimension_numbers<[2], [2], [1], [1], [0, 0, 0, 1, 1, 1], [0], [0]>} : vector<8x8x8xbf16>, vector<8x8x8xbf16>, vector<8x8x8xf32> -> vector<8x8x8xf32>
    "tpu.trace_stop"() : () -> ()
    %cst_11 = arith.constant 0.353553385 : f32
    %33 = vector.broadcast %cst_11 : f32 to vector<8x8x8xf32>
    %34 = arith.mulf %32, %33 : vector<8x8x8xf32>
    %c0_12 = arith.constant 0 : index
    %c0_13 = arith.constant 0 : index
    %35 = vector.load %arg2[%c0_12, %c0_13] : memref<2x8xf32, #tpu.memory_space<vmem>>, vector<2x8xf32>
    %36 = vector.shape_cast %35 : vector<2x8xf32> to vector<2x1x1x8xf32>
    %37 = vector.shape_cast %36 : vector<2x1x1x8xf32> to vector<2x1x1x8xf32>
    %38 = vector.broadcast %37 : vector<2x1x1x8xf32> to vector<2x4x1x8xf32>
    %39 = vector.shape_cast %38 : vector<2x4x1x8xf32> to vector<8x1x8xf32>
    %40 = vector.broadcast %39 : vector<8x1x8xf32> to vector<8x8x8xf32>
    %41 = arith.addf %34, %40 : vector<8x8x8xf32>
    %cst_14 = arith.constant dense<0xFF800000> : vector<8x8xf32>
    %42 = vector.multi_reduction <maximumf>, %41, %cst_14 [2] : vector<8x8x8xf32> to vector<8x8xf32>
    %43 = vector.shape_cast %42 : vector<8x8xf32> to vector<8x8x1xf32>
    %44 = vector.broadcast %43 : vector<8x8x1xf32> to vector<8x8x8xf32>
    %45 = arith.subf %41, %44 : vector<8x8x8xf32>
    %46 = math.exp %45 : vector<8x8x8xf32>
    %cst_15 = arith.constant dense<0.000000e+00> : vector<8x8xf32>
    %47 = vector.multi_reduction <add>, %46, %cst_15 [2] : vector<8x8x8xf32> to vector<8x8xf32>
    %48 = vector.shape_cast %47 : vector<8x8xf32> to vector<8x8x1xf32>
    %49 = tpu.reciprocal %48 {approx = true} : vector<8x8x1xf32> -> vector<8x8x1xf32>
    %50 = vector.broadcast %49 : vector<8x8x1xf32> to vector<8x8x8xf32>
    %51 = arith.mulf %46, %50 : vector<8x8x8xf32>
    %52 = arith.truncf %51 : vector<8x8x8xf32> to vector<8x8x8xbf16>
    "tpu.trace_start"() <{level = 10 : i32, message = "gqk,gke->gqe"}> : () -> ()
    %cst_16 = arith.constant dense<0.000000e+00> : vector<8x8x8xf32>
    %53 = tpu.matmul %52, %31, %cst_16 {dimension_numbers = #tpu.dot_dimension_numbers<[2], [1], [1], [2], [0, 0, 0, 1, 1, 2], [0], [0]>} : vector<8x8x8xbf16>, vector<8x8x8xbf16>, vector<8x8x8xf32> -> vector<8x8x8xf32>
    "tpu.trace_stop"() : () -> ()
    %c0_17 = arith.constant 0 : index
    %c0_18 = arith.constant 0 : index
    %c0_19 = arith.constant 0 : index
    %c0_20 = arith.constant 0 : index
    %54 = vector.load %arg5[%c0_17, %c0_18, %c0_19, %c0_20] : memref<1x4x8x32xbf16, #tpu.memory_space<vmem>>, vector<1x4x8x32xbf16>
    %55 = vector.shape_cast %54 : vector<1x4x8x32xbf16> to vector<4x8x32xbf16>
    %56 = vector.shape_cast %55 : vector<4x8x32xbf16> to vector<1x4x8x32xbf16>
    %57 = vector.shape_cast %56 : vector<1x4x8x32xbf16> to vector<1x4x8x32xbf16>
    %58 = vector.broadcast %57 : vector<1x4x8x32xbf16> to vector<2x4x8x32xbf16>
    %59 = vector.shape_cast %58 : vector<2x4x8x32xbf16> to vector<8x8x32xbf16>
    %60 = arith.truncf %53 : vector<8x8x8xf32> to vector<8x8x8xbf16>
    "tpu.trace_start"() <{level = 10 : i32, message = "gqe,ged->gqd"}> : () -> ()
    %cst_21 = arith.constant dense<0.000000e+00> : vector<8x8x32xf32>
    %61 = tpu.matmul %60, %59, %cst_21 {dimension_numbers = #tpu.dot_dimension_numbers<[2], [1], [1], [2], [0, 0, 0, 1, 1, 2], [0], [0]>} : vector<8x8x8xbf16>, vector<8x8x32xbf16>, vector<8x8x32xf32> -> vector<8x8x32xf32>
    "tpu.trace_stop"() : () -> ()
    %62 = vector.shape_cast %61 : vector<8x8x32xf32> to vector<2x4x8x32xf32>
    %cst_22 = arith.constant dense<0.000000e+00> : vector<2x8x32xf32>
    %63 = vector.multi_reduction <add>, %62, %cst_22 [1] : vector<2x4x8x32xf32> to vector<2x8x32xf32>
    %64 = vector.shape_cast %63 : vector<2x8x32xf32> to vector<16x32xf32>
    %c0_23 = arith.constant 0 : index
    %c0_24 = arith.constant 0 : index
    %c0_25 = arith.constant 0 : index
    %65 = vector.load %arg6[%c0_23, %c0_24, %c0_25] : memref<1x1x32xf32, #tpu.memory_space<vmem>>, vector<1x1x32xf32>
    %66 = vector.shape_cast %65 : vector<1x1x32xf32> to vector<1x32xf32>
    %67 = vector.broadcast %66 : vector<1x32xf32> to vector<16x32xf32>
    %68 = arith.addf %64, %67 : vector<16x32xf32>
    %69 = arith.addf %68, %4 : vector<16x32xf32>
    %c0_26 = arith.constant 0 : index
    %c0_27 = arith.constant 0 : index
    %c0_28 = arith.constant 0 : index
    %70 = vector.load %arg7[%c0_26, %c0_27, %c0_28] : memref<1x1x32xf32, #tpu.memory_space<vmem>>, vector<1x1x32xf32>
    %71 = vector.shape_cast %70 : vector<1x1x32xf32> to vector<1x32xf32>
    %c0_29 = arith.constant 0 : index
    %c0_30 = arith.constant 0 : index
    %c0_31 = arith.constant 0 : index
    %72 = vector.load %arg8[%c0_29, %c0_30, %c0_31] : memref<1x1x32xf32, #tpu.memory_space<vmem>>, vector<1x1x32xf32>
    %73 = vector.shape_cast %72 : vector<1x1x32xf32> to vector<1x32xf32>
    %cst_32 = arith.constant dense<0.000000e+00> : vector<16xf32>
    %74 = vector.multi_reduction <add>, %69, %cst_32 [1] : vector<16x32xf32> to vector<16xf32>
    %75 = vector.shape_cast %74 : vector<16xf32> to vector<16x1xf32>
    %cst_33 = arith.constant 3.200000e+01 : f32
    %76 = vector.broadcast %cst_33 : f32 to vector<16x1xf32>
    %77 = arith.divf %75, %76 : vector<16x1xf32>
    %78 = vector.broadcast %77 : vector<16x1xf32> to vector<16x32xf32>
    %79 = arith.subf %69, %78 : vector<16x32xf32>
    %80 = arith.mulf %79, %79 : vector<16x32xf32>
    %cst_34 = arith.constant dense<0.000000e+00> : vector<16xf32>
    %81 = vector.multi_reduction <add>, %80, %cst_34 [1] : vector<16x32xf32> to vector<16xf32>
    %82 = vector.shape_cast %81 : vector<16xf32> to vector<16x1xf32>
    %cst_35 = arith.constant 3.200000e+01 : f32
    %83 = vector.broadcast %cst_35 : f32 to vector<16x1xf32>
    %84 = arith.divf %82, %83 : vector<16x1xf32>
    %85 = vector.broadcast %77 : vector<16x1xf32> to vector<16x32xf32>
    %86 = arith.subf %69, %85 : vector<16x32xf32>
    %cst_36 = arith.constant 1.000000e-10 : f32
    %87 = vector.broadcast %cst_36 : f32 to vector<16x1xf32>
    %88 = arith.addf %84, %87 : vector<16x1xf32>
    %89 = math.rsqrt %88 : vector<16x1xf32>
    %90 = vector.broadcast %89 : vector<16x1xf32> to vector<16x32xf32>
    %91 = arith.mulf %86, %90 : vector<16x32xf32>
    %92 = vector.broadcast %71 : vector<1x32xf32> to vector<16x32xf32>
    %93 = arith.mulf %92, %91 : vector<16x32xf32>
    %94 = vector.broadcast %73 : vector<1x32xf32> to vector<16x32xf32>
    %95 = arith.addf %93, %94 : vector<16x32xf32>
    %96 = arith.truncf %95 : vector<16x32xf32> to vector<16x32xbf16>
    %c0_37 = arith.constant 0 : index
    %c0_38 = arith.constant 0 : index
    %c0_39 = arith.constant 0 : index
    %97 = vector.load %arg9[%c0_37, %c0_38, %c0_39] : memref<1x32x64xbf16, #tpu.memory_space<vmem>>, vector<1x32x64xbf16>
    %98 = vector.shape_cast %97 : vector<1x32x64xbf16> to vector<32x64xbf16>
    %cst_40 = arith.constant dense<0.000000e+00> : vector<16x64xf32>
    %99 = tpu.matmul %96, %98, %cst_40 {dimension_numbers = #tpu.dot_dimension_numbers<[1], [0], [0], [1], [0, 0, 1, 1], [], []>} : vector<16x32xbf16>, vector<32x64xbf16>, vector<16x64xf32> -> vector<16x64xf32>
    %c0_41 = arith.constant 0 : index
    %c0_42 = arith.constant 0 : index
    %c0_43 = arith.constant 0 : index
    %100 = vector.load %arg10[%c0_41, %c0_42, %c0_43] : memref<1x1x64xf32, #tpu.memory_space<vmem>>, vector<1x1x64xf32>
    %101 = vector.shape_cast %100 : vector<1x1x64xf32> to vector<1x64xf32>
    %102 = vector.broadcast %101 : vector<1x64xf32> to vector<16x64xf32>
    %103 = arith.addf %99, %102 : vector<16x64xf32>
    %cst_44 = arith.constant 0.000000e+00 : f32
    %104 = vector.broadcast %cst_44 : f32 to vector<16x64xf32>
    %105 = arith.maximumf %103, %104 : vector<16x64xf32>
    %106 = arith.truncf %105 : vector<16x64xf32> to vector<16x64xbf16>
    %c0_45 = arith.constant 0 : index
    %c0_46 = arith.constant 0 : index
    %c0_47 = arith.constant 0 : index
    %107 = vector.load %arg11[%c0_45, %c0_46, %c0_47] : memref<1x64x32xbf16, #tpu.memory_space<vmem>>, vector<1x64x32xbf16>
    %108 = vector.shape_cast %107 : vector<1x64x32xbf16> to vector<64x32xbf16>
    %cst_48 = arith.constant dense<0.000000e+00> : vector<16x32xf32>
    %109 = tpu.matmul %106, %108, %cst_48 {dimension_numbers = #tpu.dot_dimension_numbers<[1], [0], [0], [1], [0, 0, 1, 1], [], []>} : vector<16x64xbf16>, vector<64x32xbf16>, vector<16x32xf32> -> vector<16x32xf32>
    %c0_49 = arith.constant 0 : index
    %c0_50 = arith.constant 0 : index
    %c0_51 = arith.constant 0 : index
    %110 = vector.load %arg12[%c0_49, %c0_50, %c0_51] : memref<1x1x32xf32, #tpu.memory_space<vmem>>, vector<1x1x32xf32>
    %111 = vector.shape_cast %110 : vector<1x1x32xf32> to vector<1x32xf32>
    %112 = vector.broadcast %111 : vector<1x32xf32> to vector<16x32xf32>
    %113 = arith.addf %109, %112 : vector<16x32xf32>
    %114 = arith.addf %113, %95 : vector<16x32xf32>
    %c0_52 = arith.constant 0 : index
    %c0_53 = arith.constant 0 : index
    %c0_54 = arith.constant 0 : index
    %115 = vector.load %arg13[%c0_52, %c0_53, %c0_54] : memref<1x1x32xf32, #tpu.memory_space<vmem>>, vector<1x1x32xf32>
    %116 = vector.shape_cast %115 : vector<1x1x32xf32> to vector<1x32xf32>
    %c0_55 = arith.constant 0 : index
    %c0_56 = arith.constant 0 : index
    %c0_57 = arith.constant 0 : index
    %117 = vector.load %arg14[%c0_55, %c0_56, %c0_57] : memref<1x1x32xf32, #tpu.memory_space<vmem>>, vector<1x1x32xf32>
    %118 = vector.shape_cast %117 : vector<1x1x32xf32> to vector<1x32xf32>
    %cst_58 = arith.constant dense<0.000000e+00> : vector<16xf32>
    %119 = vector.multi_reduction <add>, %114, %cst_58 [1] : vector<16x32xf32> to vector<16xf32>
    %120 = vector.shape_cast %119 : vector<16xf32> to vector<16x1xf32>
    %cst_59 = arith.constant 3.200000e+01 : f32
    %121 = vector.broadcast %cst_59 : f32 to vector<16x1xf32>
    %122 = arith.divf %120, %121 : vector<16x1xf32>
    %123 = vector.broadcast %122 : vector<16x1xf32> to vector<16x32xf32>
    %124 = arith.subf %114, %123 : vector<16x32xf32>
    %125 = arith.mulf %124, %124 : vector<16x32xf32>
    %cst_60 = arith.constant dense<0.000000e+00> : vector<16xf32>
    %126 = vector.multi_reduction <add>, %125, %cst_60 [1] : vector<16x32xf32> to vector<16xf32>
    %127 = vector.shape_cast %126 : vector<16xf32> to vector<16x1xf32>
    %cst_61 = arith.constant 3.200000e+01 : f32
    %128 = vector.broadcast %cst_61 : f32 to vector<16x1xf32>
    %129 = arith.divf %127, %128 : vector<16x1xf32>
    %130 = vector.broadcast %122 : vector<16x1xf32> to vector<16x32xf32>
    %131 = arith.subf %114, %130 : vector<16x32xf32>
    %cst_62 = arith.constant 1.000000e-10 : f32
    %132 = vector.broadcast %cst_62 : f32 to vector<16x1xf32>
    %133 = arith.addf %129, %132 : vector<16x1xf32>
    %134 = math.rsqrt %133 : vector<16x1xf32>
    %135 = vector.broadcast %134 : vector<16x1xf32> to vector<16x32xf32>
    %136 = arith.mulf %131, %135 : vector<16x32xf32>
    %137 = vector.broadcast %116 : vector<1x32xf32> to vector<16x32xf32>
    %138 = arith.mulf %137, %136 : vector<16x32xf32>
    %139 = vector.broadcast %118 : vector<1x32xf32> to vector<16x32xf32>
    %140 = arith.addf %138, %139 : vector<16x32xf32>
    %141 = vector.shape_cast %140 : vector<16x32xf32> to vector<2x8x32xf32>
    %c0_63 = arith.constant 0 : index
    %c0_64 = arith.constant 0 : index
    %c0_65 = arith.constant 0 : index
    %142 = vector.load %arg15[%c0_63, %c0_64, %c0_65] : memref<2x8x32xf32, #tpu.memory_space<vmem>>, vector<2x8x32xf32>
    tpu.vector_store %arg15[%c0_63, %c0_64, %c0_65], %141 {strides = array<i32>} : memref<2x8x32xf32, #tpu.memory_space<vmem>>, vector<2x8x32xf32>,
    return
  }
  func.func @transform_0(%arg0: i32) -> (i32, i32, i32) {
    %c0_i32 = arith.constant 0 : i32
    %c0_i32_0 = arith.constant 0 : i32
    %c0_i32_1 = arith.constant 0 : i32
    %c0_i32_2 = arith.constant 0 : i32
    return %c0_i32, %c0_i32_0, %c0_i32_1 : i32, i32, i32
  }
  func.func @transform_1(%arg0: i32) -> (i32, i32) {
    %c0_i32 = arith.constant 0 : i32
    %c0_i32_0 = arith.constant 0 : i32
    %c0_i32_1 = arith.constant 0 : i32
    return %c0_i32, %c0_i32_0 : i32, i32
  }
  func.func @transform_2(%arg0: i32) -> (i32, i32, i32, i32) {
    %c0_i32 = arith.constant 0 : i32
    %c0_i32_0 = arith.constant 0 : i32
    %c0_i32_1 = arith.constant 0 : i32
    %c0_i32_2 = arith.constant 0 : i32
    return %arg0, %c0_i32, %c0_i32_0, %c0_i32_1 : i32, i32, i32, i32
  }
  func.func @transform_3(%arg0: i32) -> (i32, i32, i32) {
    %c0_i32 = arith.constant 0 : i32
    %c0_i32_0 = arith.constant 0 : i32
    %c0_i32_1 = arith.constant 0 : i32
    return %arg0, %c0_i32, %c0_i32_0 : i32, i32, i32
  }
  func.func @transform_4(%arg0: i32) -> (i32, i32, i32, i32) {
    %c0_i32 = arith.constant 0 : i32
    %c0_i32_0 = arith.constant 0 : i32
    %c0_i32_1 = arith.constant 0 : i32
    %c0_i32_2 = arith.constant 0 : i32
    return %arg0, %c0_i32, %c0_i32_0, %c0_i32_1 : i32, i32, i32, i32
  }
  func.func @transform_5(%arg0: i32) -> (i32, i32, i32) {
    %c0_i32 = arith.constant 0 : i32
    %c0_i32_0 = arith.constant 0 : i32
    %c0_i32_1 = arith.constant 0 : i32
    return %arg0, %c0_i32, %c0_i32_0 : i32, i32, i32
  }
  func.func @transform_6(%arg0: i32) -> (i32, i32, i32) {
    %c0_i32 = arith.constant 0 : i32
    %c0_i32_0 = arith.constant 0 : i32
    %c0_i32_1 = arith.constant 0 : i32
    return %arg0, %c0_i32, %c0_i32_0 : i32, i32, i32
  }
  func.func @transform_7(%arg0: i32) -> (i32, i32, i32) {
    %c0_i32 = arith.constant 0 : i32
    %c0_i32_0 = arith.constant 0 : i32
    %c0_i32_1 = arith.constant 0 : i32
    return %arg0, %c0_i32, %c0_i32_0 : i32, i32, i32
  }
  func.func @transform_8(%arg0: i32) -> (i32, i32, i32) {
    %c0_i32 = arith.constant 0 : i32
    %c0_i32_0 = arith.constant 0 : i32
    %c0_i32_1 = arith.constant 0 : i32
    return %arg0, %c0_i32, %c0_i32_0 : i32, i32, i32
  }
  func.func @transform_9(%arg0: i32) -> (i32, i32, i32) {
    %c0_i32 = arith.constant 0 : i32
    %c0_i32_0 = arith.constant 0 : i32
    %c0_i32_1 = arith.constant 0 : i32
    return %arg0, %c0_i32, %c0_i32_0 : i32, i32, i32
  }
  func.func @transform_10(%arg0: i32) -> (i32, i32, i32) {
    %c0_i32 = arith.constant 0 : i32
    %c0_i32_0 = arith.constant 0 : i32
    %c0_i32_1 = arith.constant 0 : i32
    return %arg0, %c0_i32, %c0_i32_0 : i32, i32, i32
  }
  func.func @transform_11(%arg0: i32) -> (i32, i32, i32) {
    %c0_i32 = arith.constant 0 : i32
    %c0_i32_0 = arith.constant 0 : i32
    %c0_i32_1 = arith.constant 0 : i32
    return %arg0, %c0_i32, %c0_i32_0 : i32, i32, i32
  }
  func.func @transform_12(%arg0: i32) -> (i32, i32, i32) {
    %c0_i32 = arith.constant 0 : i32
    %c0_i32_0 = arith.constant 0 : i32
    %c0_i32_1 = arith.constant 0 : i32
    return %arg0, %c0_i32, %c0_i32_0 : i32, i32, i32
  }
  func.func @transform_13(%arg0: i32) -> (i32, i32, i32) {
    %c0_i32 = arith.constant 0 : i32
    %c0_i32_0 = arith.constant 0 : i32
    %c0_i32_1 = arith.constant 0 : i32
    return %arg0, %c0_i32, %c0_i32_0 : i32, i32, i32
  }
  func.func @transform_14(%arg0: i32) -> (i32, i32, i32) {
    %c0_i32 = arith.constant 0 : i32
    %c0_i32_0 = arith.constant 0 : i32
    %c0_i32_1 = arith.constant 0 : i32
    %c0_i32_2 = arith.constant 0 : i32
    return %c0_i32, %c0_i32_0, %c0_i32_1 : i32, i32, i32
  }
}

</mosaic_0001>

<llo_original>
// kernel: tpu_custom_call.1
$region0: #{tpu_custom_call.1}
  #allocation0 [shape = 'u32[]', space=smem, size = 0x4, offset = 0x4, fixed_abs, tag = 'smem constant byte address 0x4 - core index']
  #allocation1 [shape = 'u32[72,128]{1,0:T(1,128)}', space=vmem, size = 0x9000, scoped, tag = 'internal scratch']
  %s0 = inlined_call_operand.vmem [shape: f32[2,8,32], index: 0, kind: input, shape index: {}]
  %s1 = inlined_call_operand.vmem [shape: f32[2,8], index: 1, kind: input, shape index: {}]
  %s2 = inlined_call_operand.vmem [shape: bf16[2,12,32,8], index: 2, kind: input, shape index: {}]
  %s3 = inlined_call_operand.vmem [shape: f32[2,12,8], index: 3, kind: input, shape index: {}]
  %s4 = inlined_call_operand.vmem [shape: bf16[2,4,8,32], index: 4, kind: input, shape index: {}]
  %s5 = inlined_call_operand.vmem [shape: f32[2,1,32], index: 5, kind: input, shape index: {}]
  %s6 = inlined_call_operand.vmem [shape: f32[2,1,32], index: 6, kind: input, shape index: {}]
  %s7 = inlined_call_operand.vmem [shape: f32[2,1,32], index: 7, kind: input, shape index: {}]
  %s8 = inlined_call_operand.vmem [shape: bf16[2,32,64], index: 8, kind: input, shape index: {}]
  %s9 = inlined_call_operand.vmem [shape: f32[2,1,64], index: 9, kind: input, shape index: {}]
  %s10 = inlined_call_operand.vmem [shape: bf16[2,64,32], index: 10, kind: input, shape index: {}]
  %s11 = inlined_call_operand.vmem [shape: f32[2,1,32], index: 11, kind: input, shape index: {}]
  %s12 = inlined_call_operand.vmem [shape: f32[2,1,32], index: 12, kind: input, shape index: {}]
  %s13 = inlined_call_operand.vmem [shape: f32[2,1,32], index: 13, kind: input, shape index: {}]
  %s14 = inlined_call_operand.hbm [shape: f32[2,8,32], index: 14, kind: output, shape index: {}]
  %s15 = sld [smem:[#allocation0]]
  $region93: #{tpu_custom_call.1} parent=0
    _
  %s17 = ssub.s32 1, %s15
  %s18 = scalar_select 0, %s17, %s15
  $region1: #{tpu_custom_call.1} parent=0
    #allocation2 [shape = 'u8[8192]{0}', space=vmem, size = 0x2000, scoped, tag = 'output window, operand 0, single buffered']
    #allocation3 [shape = 's32[2]{0}', space=sflag, size = 0x8, scoped, tag = 'scoped memory for tpu_custom_call.1']
    %19 = vsyncpa [#allocation3], 0
    loop: start=0, step=1, limit=4
    $region2: #{tpu_custom_call.1} parent=1 // loop_pre_header
      _
    $region3: #{tpu_custom_call.1} parent=1 // loop_header
      %s21 = sphi 0, %s25
      %p22 = scmp.ge.s32.totalorder %s21, 4
      %s29 = sphi 0, %s29
      %s31 = sphi 0, %s29
      %s32 = sphi 0, %s31
      %s46 = sphi 0, %s32
      %s50 = sphi 0, %s50
      %s52 = sphi 0, %s50
      %s53 = sphi 0, %s52
      %s67 = sphi 0, %s53
      %s73 = sphi 0, %s75
      %s76 = sphi 0, %s73
      %s77 = sphi 0, %s76
      %s93 = sphi 0, %s77
      %s99 = sphi 0, %s101
      %s102 = sphi 0, %s99
      %s103 = sphi 0, %s102
      %s119 = sphi 0, %s103
      %s125 = sphi 0, %s127
      %s128 = sphi 0, %s125
      %s129 = sphi 0, %s128
      %s145 = sphi 0, %s129
      %s151 = sphi 0, %s153
      %s154 = sphi 0, %s151
      %s155 = sphi 0, %s154
      %s171 = sphi 0, %s155
      %s177 = sphi 0, %s179
      %s180 = sphi 0, %s177
      %s181 = sphi 0, %s180
      %s197 = sphi 0, %s181
      %s203 = sphi 0, %s205
      %s206 = sphi 0, %s203
      %s207 = sphi 0, %s206
      %s223 = sphi 0, %s207
      %s229 = sphi 0, %s231
      %s232 = sphi 0, %s229
      %s233 = sphi 0, %s232
      %s249 = sphi 0, %s233
      %s255 = sphi 0, %s257
      %s258 = sphi 0, %s255
      %s259 = sphi 0, %s258
      %s275 = sphi 0, %s259
      %s281 = sphi 0, %s283
      %s284 = sphi 0, %s281
      %s285 = sphi 0, %s284
      %s301 = sphi 0, %s285
      %s307 = sphi 0, %s309
      %s310 = sphi 0, %s307
      %s311 = sphi 0, %s310
      %s327 = sphi 0, %s311
      %s333 = sphi 0, %s335
      %s336 = sphi 0, %s333
      %s337 = sphi 0, %s336
      %s353 = sphi 0, %s337
      %s359 = sphi 0, %s361
      %s362 = sphi 0, %s359
      %s363 = sphi 0, %s362
      %s379 = sphi 0, %s363
      %s383 = sphi 0, %s383
      %s385 = sphi 0, %s383
      %s386 = sphi 0, %s385
      %s400 = sphi 0, %s386
    $region4: #{tpu_custom_call.1} parent=1 // loop_header_branch
      %24 = sbr.rel (%p22) target = $region8
    $region5: #{tpu_custom_call.1} parent=1 // loop_body
      %s26 = ssub.s32 %s21, 1
      %s27 = ssub.s32 %s21, 2
      %s28 = sadd.s32 %s21, 1
      %s30 = sadd.s32 %s29, 1
      %p33 = scmp.eq.s32.totalorder %s21, 1
      %p34 = scmp.ne.s32.totalorder %s29, %s31
      %p35 = scmp.eq.s32.totalorder %s21, 0
      %p36 = por %p34, %p35
      %p37 = scmp.ne.s32.totalorder %s29, %s31
      %p38 = scmp.eq.s32.totalorder %s26, 1
      %p39 = por %p37, %p38
      %p40 = scmp.ne.s32.totalorder %s31, %s32
      %p41 = scmp.eq.s32.totalorder %s26, 0
      %p42 = por %p40, %p41
      %p43 = scmp.ne.s32.totalorder %s31, %s32
      %p44 = scmp.eq.s32.totalorder %s27, 1
      %p45 = por %p43, %p44
      %p47 = scmp.ne.s32.totalorder %s32, %s46
      %p48 = scmp.eq.s32.totalorder %s27, 0
      %p49 = por %p47, %p48
      %s51 = sadd.s32 %s50, 1
      %p54 = scmp.eq.s32.totalorder %s21, 1
      %p55 = scmp.ne.s32.totalorder %s50, %s52
      %p56 = scmp.eq.s32.totalorder %s21, 0
      %p57 = por %p55, %p56
      %p58 = scmp.ne.s32.totalorder %s50, %s52
      %p59 = scmp.eq.s32.totalorder %s26, 1
      %p60 = por %p58, %p59
      %p61 = scmp.ne.s32.totalorder %s52, %s53
      %p62 = scmp.eq.s32.totalorder %s26, 0
      %p63 = por %p61, %p62
      %p64 = scmp.ne.s32.totalorder %s52, %s53
      %p65 = scmp.eq.s32.totalorder %s27, 1
      %p66 = por %p64, %p65
      %p68 = scmp.ne.s32.totalorder %s53, %s67
      %p69 = scmp.eq.s32.totalorder %s27, 0
      %p70 = por %p68, %p69
      %s71 = ssub.s32 %s21, %s28
      %p72 = scmp.eq.s32.totalorder %s71, 0
      %s74 = sadd.s32 %s73, 1
      %s75 = scalar_select %p72, %s73, %s74
      %p78 = pneg %p72
      %p79 = scmp.eq.s32.totalorder %s21, 1
      %p80 = por %p78, %p79
      %p81 = scmp.ne.s32.totalorder %s73, %s76
      %p82 = scmp.eq.s32.totalorder %s21, 0
      %p83 = por %p81, %p82
      %p84 = scmp.ne.s32.totalorder %s73, %s76
      %p85 = scmp.eq.s32.totalorder %s26, 1
      %p86 = por %p84, %p85
      %p87 = scmp.ne.s32.totalorder %s76, %s77
      %p88 = scmp.eq.s32.totalorder %s26, 0
      %p89 = por %p87, %p88
      %p90 = scmp.ne.s32.totalorder %s76, %s77
      %p91 = scmp.eq.s32.totalorder %s27, 1
      %p92 = por %p90, %p91
      %p94 = scmp.ne.s32.totalorder %s77, %s93
      %p95 = scmp.eq.s32.totalorder %s27, 0
      %p96 = por %p94, %p95
      %s97 = ssub.s32 %s21, %s28
      %p98 = scmp.eq.s32.totalorder %s97, 0
      %s100 = sadd.s32 %s99, 1
      %s101 = scalar_select %p98, %s99, %s100
      %p104 = pneg %p98
      %p105 = scmp.eq.s32.totalorder %s21, 1
      %p106 = por %p104, %p105
      %p107 = scmp.ne.s32.totalorder %s99, %s102
      %p108 = scmp.eq.s32.totalorder %s21, 0
      %p109 = por %p107, %p108
      %p110 = scmp.ne.s32.totalorder %s99, %s102
      %p111 = scmp.eq.s32.totalorder %s26, 1
      %p112 = por %p110, %p111
      %p113 = scmp.ne.s32.totalorder %s102, %s103
      %p114 = scmp.eq.s32.totalorder %s26, 0
      %p115 = por %p113, %p114
      %p116 = scmp.ne.s32.totalorder %s102, %s103
      %p117 = scmp.eq.s32.totalorder %s27, 1
      %p118 = por %p116, %p117
      %p120 = scmp.ne.s32.totalorder %s103, %s119
      %p121 = scmp.eq.s32.totalorder %s27, 0
      %p122 = por %p120, %p121
      %s123 = ssub.s32 %s21, %s28
      %p124 = scmp.eq.s32.totalorder %s123, 0
      %s126 = sadd.s32 %s125, 1
      %s127 = scalar_select %p124, %s125, %s126
      %p130 = pneg %p124
      %p131 = scmp.eq.s32.totalorder %s21, 1
      %p132 = por %p130, %p131
      %p133 = scmp.ne.s32.totalorder %s125, %s128
      %p134 = scmp.eq.s32.totalorder %s21, 0
      %p135 = por %p133, %p134
      %p136 = scmp.ne.s32.totalorder %s125, %s128
      %p137 = scmp.eq.s32.totalorder %s26, 1
      %p138 = por %p136, %p137
      %p139 = scmp.ne.s32.totalorder %s128, %s129
      %p140 = scmp.eq.s32.totalorder %s26, 0
      %p141 = por %p139, %p140
      %p142 = scmp.ne.s32.totalorder %s128, %s129
      %p143 = scmp.eq.s32.totalorder %s27, 1
      %p144 = por %p142, %p143
      %p146 = scmp.ne.s32.totalorder %s129, %s145
      %p147 = scmp.eq.s32.totalorder %s27, 0
      %p148 = por %p146, %p147
      %s149 = ssub.s32 %s21, %s28
      %p150 = scmp.eq.s32.totalorder %s149, 0
      %s152 = sadd.s32 %s151, 1
      %s153 = scalar_select %p150, %s151, %s152
      %p156 = pneg %p150
      %p157 = scmp.eq.s32.totalorder %s21, 1
      %p158 = por %p156, %p157
      %p159 = scmp.ne.s32.totalorder %s151, %s154
      %p160 = scmp.eq.s32.totalorder %s21, 0
      %p161 = por %p159, %p160
      %p162 = scmp.ne.s32.totalorder %s151, %s154
      %p163 = scmp.eq.s32.totalorder %s26, 1
      %p164 = por %p162, %p163
      %p165 = scmp.ne.s32.totalorder %s154, %s155
      %p166 = scmp.eq.s32.totalorder %s26, 0
      %p167 = por %p165, %p166
      %p168 = scmp.ne.s32.totalorder %s154, %s155
      %p169 = scmp.eq.s32.totalorder %s27, 1
      %p170 = por %p168, %p169
      %p172 = scmp.ne.s32.totalorder %s155, %s171
      %p173 = scmp.eq.s32.totalorder %s27, 0
      %p174 = por %p172, %p173
      %s175 = ssub.s32 %s21, %s28
      %p176 = scmp.eq.s32.totalorder %s175, 0
      %s178 = sadd.s32 %s177, 1
      %s179 = scalar_select %p176, %s177, %s178
      %p182 = pneg %p176
      %p183 = scmp.eq.s32.totalorder %s21, 1
      %p184 = por %p182, %p183
      %p185 = scmp.ne.s32.totalorder %s177, %s180
      %p186 = scmp.eq.s32.totalorder %s21, 0
      %p187 = por %p185, %p186
      %p188 = scmp.ne.s32.totalorder %s177, %s180
      %p189 = scmp.eq.s32.totalorder %s26, 1
      %p190 = por %p188, %p189
      %p191 = scmp.ne.s32.totalorder %s180, %s181
      %p192 = scmp.eq.s32.totalorder %s26, 0
      %p193 = por %p191, %p192
      %p194 = scmp.ne.s32.totalorder %s180, %s181
      %p195 = scmp.eq.s32.totalorder %s27, 1
      %p196 = por %p194, %p195
      %p198 = scmp.ne.s32.totalorder %s181, %s197
      %p199 = scmp.eq.s32.totalorder %s27, 0
      %p200 = por %p198, %p199
      %s201 = ssub.s32 %s21, %s28
      %p202 = scmp.eq.s32.totalorder %s201, 0
      %s204 = sadd.s32 %s203, 1
      %s205 = scalar_select %p202, %s203, %s204
      %p208 = pneg %p202
      %p209 = scmp.eq.s32.totalorder %s21, 1
      %p210 = por %p208, %p209
      %p211 = scmp.ne.s32.totalorder %s203, %s206
      %p212 = scmp.eq.s32.totalorder %s21, 0
      %p213 = por %p211, %p212
      %p214 = scmp.ne.s32.totalorder %s203, %s206
      %p215 = scmp.eq.s32.totalorder %s26, 1
      %p216 = por %p214, %p215
      %p217 = scmp.ne.s32.totalorder %s206, %s207
      %p218 = scmp.eq.s32.totalorder %s26, 0
      %p219 = por %p217, %p218
      %p220 = scmp.ne.s32.totalorder %s206, %s207
      %p221 = scmp.eq.s32.totalorder %s27, 1
      %p222 = por %p220, %p221
      %p224 = scmp.ne.s32.totalorder %s207, %s223
      %p225 = scmp.eq.s32.totalorder %s27, 0
      %p226 = por %p224, %p225
      %s227 = ssub.s32 %s21, %s28
      %p228 = scmp.eq.s32.totalorder %s227, 0
      %s230 = sadd.s32 %s229, 1
      %s231 = scalar_select %p228, %s229, %s230
      %p234 = pneg %p228
      %p235 = scmp.eq.s32.totalorder %s21, 1
      %p236 = por %p234, %p235
      %p237 = scmp.ne.s32.totalorder %s229, %s232
      %p238 = scmp.eq.s32.totalorder %s21, 0
      %p239 = por %p237, %p238
      %p240 = scmp.ne.s32.totalorder %s229, %s232
      %p241 = scmp.eq.s32.totalorder %s26, 1
      %p242 = por %p240, %p241
      %p243 = scmp.ne.s32.totalorder %s232, %s233
      %p244 = scmp.eq.s32.totalorder %s26, 0
      %p245 = por %p243, %p244
      %p246 = scmp.ne.s32.totalorder %s232, %s233
      %p247 = scmp.eq.s32.totalorder %s27, 1
      %p248 = por %p246, %p247
      %p250 = scmp.ne.s32.totalorder %s233, %s249
      %p251 = scmp.eq.s32.totalorder %s27, 0
      %p252 = por %p250, %p251
      %s253 = ssub.s32 %s21, %s28
      %p254 = scmp.eq.s32.totalorder %s253, 0
      %s256 = sadd.s32 %s255, 1
      %s257 = scalar_select %p254, %s255, %s256
      %p260 = pneg %p254
      %p261 = scmp.eq.s32.totalorder %s21, 1
      %p262 = por %p260, %p261
      %p263 = scmp.ne.s32.totalorder %s255, %s258
      %p264 = scmp.eq.s32.totalorder %s21, 0
      %p265 = por %p263, %p264
      %p266 = scmp.ne.s32.totalorder %s255, %s258
      %p267 = scmp.eq.s32.totalorder %s26, 1
      %p268 = por %p266, %p267
      %p269 = scmp.ne.s32.totalorder %s258, %s259
      %p270 = scmp.eq.s32.totalorder %s26, 0
      %p271 = por %p269, %p270
      %p272 = scmp.ne.s32.totalorder %s258, %s259
      %p273 = scmp.eq.s32.totalorder %s27, 1
      %p274 = por %p272, %p273
      %p276 = scmp.ne.s32.totalorder %s259, %s275
      %p277 = scmp.eq.s32.totalorder %s27, 0
      %p278 = por %p276, %p277
      %s279 = ssub.s32 %s21, %s28
      %p280 = scmp.eq.s32.totalorder %s279, 0
      %s282 = sadd.s32 %s281, 1
      %s283 = scalar_select %p280, %s281, %s282
      %p286 = pneg %p280
      %p287 = scmp.eq.s32.totalorder %s21, 1
      %p288 = por %p286, %p287
      %p289 = scmp.ne.s32.totalorder %s281, %s284
      %p290 = scmp.eq.s32.totalorder %s21, 0
      %p291 = por %p289, %p290
      %p292 = scmp.ne.s32.totalorder %s281, %s284
      %p293 = scmp.eq.s32.totalorder %s26, 1
      %p294 = por %p292, %p293
      %p295 = scmp.ne.s32.totalorder %s284, %s285
      %p296 = scmp.eq.s32.totalorder %s26, 0
      %p297 = por %p295, %p296
      %p298 = scmp.ne.s32.totalorder %s284, %s285
      %p299 = scmp.eq.s32.totalorder %s27, 1
      %p300 = por %p298, %p299
      %p302 = scmp.ne.s32.totalorder %s285, %s301
      %p303 = scmp.eq.s32.totalorder %s27, 0
      %p304 = por %p302, %p303
      %s305 = ssub.s32 %s21, %s28
      %p306 = scmp.eq.s32.totalorder %s305, 0
      %s308 = sadd.s32 %s307, 1
      %s309 = scalar_select %p306, %s307, %s308
      %p312 = pneg %p306
      %p313 = scmp.eq.s32.totalorder %s21, 1
      %p314 = por %p312, %p313
      %p315 = scmp.ne.s32.totalorder %s307, %s310
      %p316 = scmp.eq.s32.totalorder %s21, 0
      %p317 = por %p315, %p316
      %p318 = scmp.ne.s32.totalorder %s307, %s310
      %p319 = scmp.eq.s32.totalorder %s26, 1
      %p320 = por %p318, %p319
      %p321 = scmp.ne.s32.totalorder %s310, %s311
      %p322 = scmp.eq.s32.totalorder %s26, 0
      %p323 = por %p321, %p322
      %p324 = scmp.ne.s32.totalorder %s310, %s311
      %p325 = scmp.eq.s32.totalorder %s27, 1
      %p326 = por %p324, %p325
      %p328 = scmp.ne.s32.totalorder %s311, %s327
      %p329 = scmp.eq.s32.totalorder %s27, 0
      %p330 = por %p328, %p329
      %s331 = ssub.s32 %s21, %s28
      %p332 = scmp.eq.s32.totalorder %s331, 0
      %s334 = sadd.s32 %s333, 1
      %s335 = scalar_select %p332, %s333, %s334
      %p338 = pneg %p332
      %p339 = scmp.eq.s32.totalorder %s21, 1
      %p340 = por %p338, %p339
      %p341 = scmp.ne.s32.totalorder %s333, %s336
      %p342 = scmp.eq.s32.totalorder %s21, 0
      %p343 = por %p341, %p342
      %p344 = scmp.ne.s32.totalorder %s333, %s336
      %p345 = scmp.eq.s32.totalorder %s26, 1
      %p346 = por %p344, %p345
      %p347 = scmp.ne.s32.totalorder %s336, %s337
      %p348 = scmp.eq.s32.totalorder %s26, 0
      %p349 = por %p347, %p348
      %p350 = scmp.ne.s32.totalorder %s336, %s337
      %p351 = scmp.eq.s32.totalorder %s27, 1
      %p352 = por %p350, %p351
      %p354 = scmp.ne.s32.totalorder %s337, %s353
      %p355 = scmp.eq.s32.totalorder %s27, 0
      %p356 = por %p354, %p355
      %s357 = ssub.s32 %s21, %s28
      %p358 = scmp.eq.s32.totalorder %s357, 0
      %s360 = sadd.s32 %s359, 1
      %s361 = scalar_select %p358, %s359, %s360
      %p364 = pneg %p358
      %p365 = scmp.eq.s32.totalorder %s21, 1
      %p366 = por %p364, %p365
      %p367 = scmp.ne.s32.totalorder %s359, %s362
      %p368 = scmp.eq.s32.totalorder %s21, 0
      %p369 = por %p367, %p368
      %p370 = scmp.ne.s32.totalorder %s359, %s362
      %p371 = scmp.eq.s32.totalorder %s26, 1
      %p372 = por %p370, %p371
      %p373 = scmp.ne.s32.totalorder %s362, %s363
      %p374 = scmp.eq.s32.totalorder %s26, 0
      %p375 = por %p373, %p374
      %p376 = scmp.ne.s32.totalorder %s362, %s363
      %p377 = scmp.eq.s32.totalorder %s27, 1
      %p378 = por %p376, %p377
      %p380 = scmp.ne.s32.totalorder %s363, %s379
      %p381 = scmp.eq.s32.totalorder %s27, 0
      %p382 = por %p380, %p381
      %s384 = sadd.s32 %s383, 1
      %p387 = scmp.eq.s32.totalorder %s21, 1
      %p388 = scmp.ne.s32.totalorder %s383, %s385
      %p389 = scmp.eq.s32.totalorder %s21, 0
      %p390 = por %p388, %p389
      %p391 = scmp.ne.s32.totalorder %s383, %s385
      %p392 = scmp.eq.s32.totalorder %s26, 1
      %p393 = por %p391, %p392
      %p394 = scmp.ne.s32.totalorder %s385, %s386
      %p395 = scmp.eq.s32.totalorder %s26, 0
      %p396 = por %p394, %p395
      %p397 = scmp.ne.s32.totalorder %s385, %s386
      %p398 = scmp.eq.s32.totalorder %s27, 1
      %p399 = por %p397, %p398
      %p401 = scmp.ne.s32.totalorder %s386, %s400
      %p402 = scmp.eq.s32.totalorder %s27, 0
      %p403 = por %p401, %p402
      %p404 = scmp.le.s32.totalorder 1, %s21
      %p405 = scmp.lt.s32.totalorder %s21, 3
      %p406 = pnand %p404, %p405
      %p407 = pneg %p406
      // Predicated region
      $region9: #{tpu_custom_call.1} parent=5 // pred_check
        _
      $region10: #{tpu_custom_call.1} parent=5 // pred_check_branch
        %409 = sbr.rel (%p406) target = $region12
      $region11: #{tpu_custom_call.1} parent=5 // pred_region
        %s410 = ssub.s32 %s21, 1
        // Predicated region
        $region13: #{tpu_custom_call.1} parent=11 // pred_check
          %p411 = pneg %p42
        $region14: #{tpu_custom_call.1} parent=11 // pred_check_branch
          %413 = sbr.rel (%p411) target = $region16
        $region15: #{tpu_custom_call.1} parent=11 // pred_region
          _
        $region16: #{tpu_custom_call.1} parent=11 // pred_fallthru
          _
        // Predicated region
        $region17: #{tpu_custom_call.1} parent=11 // pred_check
          %p414 = pneg %p63
        $region18: #{tpu_custom_call.1} parent=11 // pred_check_branch
          %416 = sbr.rel (%p414) target = $region20
        $region19: #{tpu_custom_call.1} parent=11 // pred_region
          _
        $region20: #{tpu_custom_call.1} parent=11 // pred_fallthru
          _
      $region12: #{tpu_custom_call.1} parent=5 // pred_fallthru
        _
      %p417 = scmp.lt.s32.totalorder %s21, 2
      // Predicated region
      $region21: #{tpu_custom_call.1} parent=5 // pred_check
        %p418 = pneg %p417
      $region22: #{tpu_custom_call.1} parent=5 // pred_check_branch
        %420 = sbr.rel (%p418) target = $region24
      $region23: #{tpu_custom_call.1} parent=5 // pred_region
        // Predicated region
        $region25: #{tpu_custom_call.1} parent=23 // pred_check
          %p421 = pneg %p83
        $region26: #{tpu_custom_call.1} parent=23 // pred_check_branch
          %423 = sbr.rel (%p421) target = $region28
        $region27: #{tpu_custom_call.1} parent=23 // pred_region
          %p424 = scmp.lt.s32.totalorder %s21, 1
          %s425 = scalar_select %p424, %s21, 1
          %s426 = smul.addr %s425, 48
          %s427 = smul.addr %s426, 4
          %s428 = scalar_lea.vmem %s2, %s427
        $region28: #{tpu_custom_call.1} parent=23 // pred_fallthru
          _
        // Predicated region
        $region29: #{tpu_custom_call.1} parent=23 // pred_check
          %p429 = pneg %p109
        $region30: #{tpu_custom_call.1} parent=23 // pred_check_branch
          %431 = sbr.rel (%p429) target = $region32
        $region31: #{tpu_custom_call.1} parent=23 // pred_region
          %p432 = scmp.lt.s32.totalorder %s21, 1
          %s433 = scalar_select %p432, %s21, 1
          %s434 = smul.addr %s433, 2
          %s435 = smul.addr %s434, 8
          %s436 = scalar_lea.vmem %s3, %s435
        $region32: #{tpu_custom_call.1} parent=23 // pred_fallthru
          _
        // Predicated region
        $region33: #{tpu_custom_call.1} parent=23 // pred_check
          %p437 = pneg %p135
        $region34: #{tpu_custom_call.1} parent=23 // pred_check_branch
          %439 = sbr.rel (%p437) target = $region36
        $region35: #{tpu_custom_call.1} parent=23 // pred_region
          %p440 = scmp.lt.s32.totalorder %s21, 1
          %s441 = scalar_select %p440, %s21, 1
          %s442 = smul.addr %s441, 4
          %s443 = smul.addr %s442, 4
          %s444 = scalar_lea.vmem %s4, %s443
        $region36: #{tpu_custom_call.1} parent=23 // pred_fallthru
          _
        // Predicated region
        $region37: #{tpu_custom_call.1} parent=23 // pred_check
          %p445 = pneg %p161
        $region38: #{tpu_custom_call.1} parent=23 // pred_check_branch
          %447 = sbr.rel (%p445) target = $region40
        $region39: #{tpu_custom_call.1} parent=23 // pred_region
          %p448 = scmp.lt.s32.totalorder %s21, 1
          %s449 = scalar_select %p448, %s21, 1
          %s450 = scalar_lea.vmem %s5, %s449
        $region40: #{tpu_custom_call.1} parent=23 // pred_fallthru
          _
        // Predicated region
        $region41: #{tpu_custom_call.1} parent=23 // pred_check
          %p451 = pneg %p187
        $region42: #{tpu_custom_call.1} parent=23 // pred_check_branch
          %453 = sbr.rel (%p451) target = $region44
        $region43: #{tpu_custom_call.1} parent=23 // pred_region
          %p454 = scmp.lt.s32.totalorder %s21, 1
          %s455 = scalar_select %p454, %s21, 1
          %s456 = scalar_lea.vmem %s6, %s455
        $region44: #{tpu_custom_call.1} parent=23 // pred_fallthru
          _
        // Predicated region
        $region45: #{tpu_custom_call.1} parent=23 // pred_check
          %p457 = pneg %p213
        $region46: #{tpu_custom_call.1} parent=23 // pred_check_branch
          %459 = sbr.rel (%p457) target = $region48
        $region47: #{tpu_custom_call.1} parent=23 // pred_region
          %p460 = scmp.lt.s32.totalorder %s21, 1
          %s461 = scalar_select %p460, %s21, 1
          %s462 = scalar_lea.vmem %s7, %s461
        $region48: #{tpu_custom_call.1} parent=23 // pred_fallthru
          _
        // Predicated region
        $region49: #{tpu_custom_call.1} parent=23 // pred_check
          %p463 = pneg %p239
        $region50: #{tpu_custom_call.1} parent=23 // pred_check_branch
          %465 = sbr.rel (%p463) target = $region52
        $region51: #{tpu_custom_call.1} parent=23 // pred_region
          %p466 = scmp.lt.s32.totalorder %s21, 1
          %s467 = scalar_select %p466, %s21, 1
          %s468 = smul.addr %s467, 4
          %s469 = smul.addr %s468, 4
          %s470 = scalar_lea.vmem %s8, %s469
        $region52: #{tpu_custom_call.1} parent=23 // pred_fallthru
          _
        // Predicated region
        $region53: #{tpu_custom_call.1} parent=23 // pred_check
          %p471 = pneg %p265
        $region54: #{tpu_custom_call.1} parent=23 // pred_check_branch
          %473 = sbr.rel (%p471) target = $region56
        $region55: #{tpu_custom_call.1} parent=23 // pred_region
          %p474 = scmp.lt.s32.totalorder %s21, 1
          %s475 = scalar_select %p474, %s21, 1
          %s476 = scalar_lea.vmem %s9, %s475
        $region56: #{tpu_custom_call.1} parent=23 // pred_fallthru
          _
        // Predicated region
        $region57: #{tpu_custom_call.1} parent=23 // pred_check
          %p477 = pneg %p291
        $region58: #{tpu_custom_call.1} parent=23 // pred_check_branch
          %479 = sbr.rel (%p477) target = $region60
        $region59: #{tpu_custom_call.1} parent=23 // pred_region
          %p480 = scmp.lt.s32.totalorder %s21, 1
          %s481 = scalar_select %p480, %s21, 1
          %s482 = smul.addr %s481, 8
          %s483 = smul.addr %s482, 4
          %s484 = scalar_lea.vmem %s10, %s483
        $region60: #{tpu_custom_call.1} parent=23 // pred_fallthru
          _
        // Predicated region
        $region61: #{tpu_custom_call.1} parent=23 // pred_check
          %p485 = pneg %p317
        $region62: #{tpu_custom_call.1} parent=23 // pred_check_branch
          %487 = sbr.rel (%p485) target = $region64
        $region63: #{tpu_custom_call.1} parent=23 // pred_region
          %p488 = scmp.lt.s32.totalorder %s21, 1
          %s489 = scalar_select %p488, %s21, 1
          %s490 = scalar_lea.vmem %s11, %s489
        $region64: #{tpu_custom_call.1} parent=23 // pred_fallthru
          _
        // Predicated region
        $region65: #{tpu_custom_call.1} parent=23 // pred_check
          %p491 = pneg %p343
        $region66: #{tpu_custom_call.1} parent=23 // pred_check_branch
          %493 = sbr.rel (%p491) target = $region68
        $region67: #{tpu_custom_call.1} parent=23 // pred_region
          %p494 = scmp.lt.s32.totalorder %s21, 1
          %s495 = scalar_select %p494, %s21, 1
          %s496 = scalar_lea.vmem %s12, %s495
        $region68: #{tpu_custom_call.1} parent=23 // pred_fallthru
          _
        // Predicated region
        $region69: #{tpu_custom_call.1} parent=23 // pred_check
          %p497 = pneg %p369
        $region70: #{tpu_custom_call.1} parent=23 // pred_check_branch
          %499 = sbr.rel (%p497) target = $region72
        $region71: #{tpu_custom_call.1} parent=23 // pred_region
          %p500 = scmp.lt.s32.totalorder %s21, 1
          %s501 = scalar_select %p500, %s21, 1
          %s502 = scalar_lea.vmem %s13, %s501
        $region72: #{tpu_custom_call.1} parent=23 // pred_fallthru
          _
      $region24: #{tpu_custom_call.1} parent=5 // pred_fallthru
        _
      %p503 = scmp.le.s32.totalorder 1, %s21
      %p504 = scmp.lt.s32.totalorder %s21, 3
      %p505 = pnand %p503, %p504
      %p506 = pneg %p505
      // Predicated region
      $region73: #{tpu_custom_call.1} parent=5 // pred_check
        _
      $region74: #{tpu_custom_call.1} parent=5 // pred_check_branch
        %508 = sbr.rel (%p505) target = $region76
      $region75: #{tpu_custom_call.1} parent=5 // pred_region
        %s509 = ssub.s32 %s21, 1
        %p510 = pneg %p42
        %p511 = pneg %p39
        %p512 = pneg %p63
        %p513 = pneg %p60
        %p514 = scmp.lt.s32.totalorder %s26, 1
        %s515 = scalar_select %p514, %s26, 1
        %s516 = smul.addr %s515, 48
        %s517 = smul.addr %s516, 4
        %s518 = scalar_lea.vmem %s2, %s517
        %p519 = pneg %p89
        %p520 = pneg %p86
        %p521 = scmp.lt.s32.totalorder %s26, 1
        %s522 = scalar_select %p521, %s26, 1
        %s523 = smul.addr %s522, 2
        %s524 = smul.addr %s523, 8
        %s525 = scalar_lea.vmem %s3, %s524
        %p526 = pneg %p115
        %p527 = pneg %p112
        %p528 = scmp.lt.s32.totalorder %s26, 1
        %s529 = scalar_select %p528, %s26, 1
        %s530 = smul.addr %s529, 4
        %s531 = smul.addr %s530, 4
        %s532 = scalar_lea.vmem %s4, %s531
        %p533 = pneg %p141
        %p534 = pneg %p138
        %p535 = scmp.lt.s32.totalorder %s26, 1
        %s536 = scalar_select %p535, %s26, 1
        %s537 = scalar_lea.vmem %s5, %s536
        %p538 = pneg %p167
        %p539 = pneg %p164
        %p540 = scmp.lt.s32.totalorder %s26, 1
        %s541 = scalar_select %p540, %s26, 1
        %s542 = scalar_lea.vmem %s6, %s541
        %p543 = pneg %p193
        %p544 = pneg %p190
        %p545 = scmp.lt.s32.totalorder %s26, 1
        %s546 = scalar_select %p545, %s26, 1
        %s547 = scalar_lea.vmem %s7, %s546
        %p548 = pneg %p219
        %p549 = pneg %p216
        %p550 = scmp.lt.s32.totalorder %s26, 1
        %s551 = scalar_select %p550, %s26, 1
        %s552 = smul.addr %s551, 4
        %s553 = smul.addr %s552, 4
        %s554 = scalar_lea.vmem %s8, %s553
        %p555 = pneg %p245
        %p556 = pneg %p242
        %p557 = scmp.lt.s32.totalorder %s26, 1
        %s558 = scalar_select %p557, %s26, 1
        %s559 = scalar_lea.vmem %s9, %s558
        %p560 = pneg %p271
        %p561 = pneg %p268
        %p562 = scmp.lt.s32.totalorder %s26, 1
        %s563 = scalar_select %p562, %s26, 1
        %s564 = smul.addr %s563, 8
        %s565 = smul.addr %s564, 4
        %s566 = scalar_lea.vmem %s10, %s565
        %p567 = pneg %p297
        %p568 = pneg %p294
        %p569 = scmp.lt.s32.totalorder %s26, 1
        %s570 = scalar_select %p569, %s26, 1
        %s571 = scalar_lea.vmem %s11, %s570
        %p572 = pneg %p323
        %p573 = pneg %p320
        %p574 = scmp.lt.s32.totalorder %s26, 1
        %s575 = scalar_select %p574, %s26, 1
        %s576 = scalar_lea.vmem %s12, %s575
        %p577 = pneg %p349
        %p578 = pneg %p346
        %p579 = scmp.lt.s32.totalorder %s26, 1
        %s580 = scalar_select %p579, %s26, 1
        %s581 = scalar_lea.vmem %s13, %s580
        %p582 = pneg %p375
        %p583 = pneg %p372
        %p584 = pneg %p396
        %p585 = pneg %p393
        %p586 = scmp.lt.s32.totalorder %s26, 1
        %s587 = scalar_select %p586, %s26, 1
        %s588 = smul.addr %s587, 48
        %s589 = smul.addr %s588, 4
        %s590 = scalar_lea.vmem %s2, %s589
        %p591 = scmp.lt.s32.totalorder %s26, 1
        %s592 = scalar_select %p591, %s26, 1
        %s593 = smul.addr %s592, 2
        %s594 = smul.addr %s593, 8
        %s595 = scalar_lea.vmem %s3, %s594
        %p596 = scmp.lt.s32.totalorder %s26, 1
        %s597 = scalar_select %p596, %s26, 1
        %s598 = smul.addr %s597, 4
        %s599 = smul.addr %s598, 4
        %s600 = scalar_lea.vmem %s4, %s599
        %p601 = scmp.lt.s32.totalorder %s26, 1
        %s602 = scalar_select %p601, %s26, 1
        %s603 = scalar_lea.vmem %s5, %s602
        %p604 = scmp.lt.s32.totalorder %s26, 1
        %s605 = scalar_select %p604, %s26, 1
        %s606 = scalar_lea.vmem %s6, %s605
        %p607 = scmp.lt.s32.totalorder %s26, 1
        %s608 = scalar_select %p607, %s26, 1
        %s609 = scalar_lea.vmem %s7, %s608
        %p610 = scmp.lt.s32.totalorder %s26, 1
        %s611 = scalar_select %p610, %s26, 1
        %s612 = smul.addr %s611, 4
        %s613 = smul.addr %s612, 4
        %s614 = scalar_lea.vmem %s8, %s613
        %p615 = scmp.lt.s32.totalorder %s26, 1
        %s616 = scalar_select %p615, %s26, 1
        %s617 = scalar_lea.vmem %s9, %s616
        %p618 = scmp.lt.s32.totalorder %s26, 1
        %s619 = scalar_select %p618, %s26, 1
        %s620 = smul.addr %s619, 8
        %s621 = smul.addr %s620, 4
        %s622 = scalar_lea.vmem %s10, %s621
        %p623 = scmp.lt.s32.totalorder %s26, 1
        %s624 = scalar_select %p623, %s26, 1
        %s625 = scalar_lea.vmem %s11, %s624
        %p626 = scmp.lt.s32.totalorder %s26, 1
        %s627 = scalar_select %p626, %s26, 1
        %s628 = scalar_lea.vmem %s12, %s627
        %p629 = scmp.lt.s32.totalorder %s26, 1
        %s630 = scalar_select %p629, %s26, 1
        %s631 = scalar_lea.vmem %s13, %s630
        %p633 = scmp.eq.s32.totalorder %s26, 0
        // Predicated region
        $region77: #{tpu_custom_call.1} parent=75 // pred_check
          %p634 = pneg %p633
        $region78: #{tpu_custom_call.1} parent=75 // pred_check_branch
          %636 = sbr.rel (%p634) target = $region80
        $region79: #{tpu_custom_call.1} parent=75 // pred_region
          %v637 = vld [vmem:[%s0] sm:$0xff]
          %v638 = vld [vmem:[%s0 + $0x8] sm:$0xff]
          %vm639 = vcmask 261120
          %640 = vst.msk [vmem:[#allocation2] sm:$0xff] %vm639, %v637
          %641 = vst.msk [vmem:[#allocation2 + $0x8] sm:$0xff] %vm639, %v638
        $region80: #{tpu_custom_call.1} parent=75 // pred_fallthru
          _
        %v642 = vld [vmem:[#allocation2] sm:$0xff]
        %v643 = vld [vmem:[#allocation2 + $0x8] sm:$0xff]
        %v644 = vpack.c.bf16 %v642, %v642
        %v645 = vpack.c.bf16 %v643, %v643
        %v646 = vld [vmem:[%s590] sm:$0xf]
        %v647 = vld [vmem:[%s590 + $0x4] sm:$0xf]
        %v648 = vld [vmem:[%s590 + $0x8] sm:$0xf]
        %v649 = vld [vmem:[%s590 + $0xc] sm:$0xf]
        %v650 = vld [vmem:[%s590 + $0x10] sm:$0xf]
        %v651 = vld [vmem:[%s590 + $0x14] sm:$0xf]
        %v652 = vld [vmem:[%s590 + $0x18] sm:$0xf]
        %v653 = vld [vmem:[%s590 + $0x1c] sm:$0xf]
        %v654 = vld [vmem:[%s590 + $0x20] sm:$0xf]
        %v655 = vld [vmem:[%s590 + $0x24] sm:$0xf]
        %v656 = vld [vmem:[%s590 + $0x28] sm:$0xf]
        %v657 = vld [vmem:[%s590 + $0x2c] sm:$0xf]
        %v658 = vld [vmem:[%s590 + $0x30] sm:$0xf]
        %v659 = vld [vmem:[%s590 + $0x34] sm:$0xf]
        %v660 = vld [vmem:[%s590 + $0x38] sm:$0xf]
        %v661 = vld [vmem:[%s590 + $0x3c] sm:$0xf]
        %v662 = vld [vmem:[%s590 + $0x40] sm:$0xf]
        %v663 = vld [vmem:[%s590 + $0x44] sm:$0xf]
        %v664 = vld [vmem:[%s590 + $0x48] sm:$0xf]
        %v665 = vld [vmem:[%s590 + $0x4c] sm:$0xf]
        %v666 = vld [vmem:[%s590 + $0x50] sm:$0xf]
        %v667 = vld [vmem:[%s590 + $0x54] sm:$0xf]
        %v668 = vld [vmem:[%s590 + $0x58] sm:$0xf]
        %v669 = vld [vmem:[%s590 + $0x5c] sm:$0xf]
        %v670 = vld [vmem:[%s590 + $0x60] sm:$0xf]
        %v671 = vld [vmem:[%s590 + $0x64] sm:$0xf]
        %v672 = vld [vmem:[%s590 + $0x68] sm:$0xf]
        %v673 = vld [vmem:[%s590 + $0x6c] sm:$0xf]
        %v674 = vld [vmem:[%s590 + $0x70] sm:$0xf]
        %v675 = vld [vmem:[%s590 + $0x74] sm:$0xf]
        %v676 = vld [vmem:[%s590 + $0x78] sm:$0xf]
        %v677 = vld [vmem:[%s590 + $0x7c] sm:$0xf]
        %v678 = vld [vmem:[%s590 + $0x80] sm:$0xf]
        %v679 = vld [vmem:[%s590 + $0x84] sm:$0xf]
        %v680 = vld [vmem:[%s590 + $0x88] sm:$0xf]
        %v681 = vld [vmem:[%s590 + $0x8c] sm:$0xf]
        %v682 = vld [vmem:[%s590 + $0x90] sm:$0xf]
        %v683 = vld [vmem:[%s590 + $0x94] sm:$0xf]
        %v684 = vld [vmem:[%s590 + $0x98] sm:$0xf]
        %v685 = vld [vmem:[%s590 + $0x9c] sm:$0xf]
        %v686 = vld [vmem:[%s590 + $0xa0] sm:$0xf]
        %v687 = vld [vmem:[%s590 + $0xa4] sm:$0xf]
        %v688 = vld [vmem:[%s590 + $0xa8] sm:$0xf]
        %v689 = vld [vmem:[%s590 + $0xac] sm:$0xf]
        %v690 = vld [vmem:[%s590 + $0xb0] sm:$0xf]
        %v691 = vld [vmem:[%s590 + $0xb4] sm:$0xf]
        %v692 = vld [vmem:[%s590 + $0xb8] sm:$0xf]
        %v693 = vld [vmem:[%s590 + $0xbc] sm:$0xf]
        %v698 = vunpack.c.l.b16 %v646
        %v699 = vunpack.c.l.b16 %v647
        %v700 = vunpack.c.l.b16 %v648
        %v701 = vunpack.c.l.b16 %v649
        %v702 = vpack.c.b16 %v699, %v698
        %v703 = vpack.c.b16 %v701, %v700
        %vm706 = vcmask 261120
        %v708 = vsel %vm706, %v644, 0
        %710 = vmatpush.bf16.msra.mxu0 0
        %711 = vmatpush.bf16.msra.mxu0 0
        %712 = vmatpush.bf16.msra.mxu0 0
        %713 = vmatpush.bf16.msra.mxu0 0
        %714 = vmatpush.bf16.msra.mxu0 0
        %715 = vmatpush.bf16.msra.mxu0 0
        %716 = vmatpush.bf16.msra.mxu0 %v703
        %717 = vmatpush.bf16.msra.mxu0 %v702
        %718 = vmatmul.bf16.gmra.mxu0 %v708
        %v719 = vpop.f32.mrf.mxu0
        %v720 = vadd.f32 0.0, %v719
        %v721 = vpop.f32.mrf.mxu0
        %722 = vdwg.mxu0
        %v727 = vunpack.c.l.b16 %v650
        %v728 = vunpack.c.l.b16 %v651
        %v729 = vunpack.c.l.b16 %v652
        %v730 = vunpack.c.l.b16 %v653
        %v731 = vpack.c.b16 %v728, %v727
        %v732 = vpack.c.b16 %v730, %v729
        %735 = vmatpush.bf16.msra.mxu0 0
        %736 = vmatpush.bf16.msra.mxu0 0
        %737 = vmatpush.bf16.msra.mxu0 0
        %738 = vmatpush.bf16.msra.mxu0 0
        %739 = vmatpush.bf16.msra.mxu0 0
        %740 = vmatpush.bf16.msra.mxu0 0
        %741 = vmatpush.bf16.msra.mxu0 %v732
        %742 = vmatpush.bf16.msra.mxu0 %v731
        %743 = vmatmul.bf16.gmra.mxu0 %v708
        %v744 = vpop.f32.mrf.mxu0
        %v745 = vadd.f32 0.0, %v744
        %v746 = vpop.f32.mrf.mxu0
        %747 = vdwg.mxu0
        %v752 = vunpack.c.l.b16 %v654
        %v753 = vunpack.c.l.b16 %v655
        %v754 = vunpack.c.l.b16 %v656
        %v755 = vunpack.c.l.b16 %v657
        %v756 = vpack.c.b16 %v753, %v752
        %v757 = vpack.c.b16 %v755, %v754
        %760 = vmatpush.bf16.msra.mxu0 0
        %761 = vmatpush.bf16.msra.mxu0 0
        %762 = vmatpush.bf16.msra.mxu0 0
        %763 = vmatpush.bf16.msra.mxu0 0
        %764 = vmatpush.bf16.msra.mxu0 0
        %765 = vmatpush.bf16.msra.mxu0 0
        %766 = vmatpush.bf16.msra.mxu0 %v757
        %767 = vmatpush.bf16.msra.mxu0 %v756
        %768 = vmatmul.bf16.gmra.mxu0 %v708
        %v769 = vpop.f32.mrf.mxu0
        %v770 = vadd.f32 0.0, %v769
        %v771 = vpop.f32.mrf.mxu0
        %772 = vdwg.mxu0
        %v777 = vunpack.c.l.b16 %v658
        %v778 = vunpack.c.l.b16 %v659
        %v779 = vunpack.c.l.b16 %v660
        %v780 = vunpack.c.l.b16 %v661
        %v781 = vpack.c.b16 %v778, %v777
        %v782 = vpack.c.b16 %v780, %v779
        %785 = vmatpush.bf16.msra.mxu0 0
        %786 = vmatpush.bf16.msra.mxu0 0
        %787 = vmatpush.bf16.msra.mxu0 0
        %788 = vmatpush.bf16.msra.mxu0 0
        %789 = vmatpush.bf16.msra.mxu0 0
        %790 = vmatpush.bf16.msra.mxu0 0
        %791 = vmatpush.bf16.msra.mxu0 %v782
        %792 = vmatpush.bf16.msra.mxu0 %v781
        %793 = vmatmul.bf16.gmra.mxu0 %v708
        %v794 = vpop.f32.mrf.mxu0
        %v795 = vadd.f32 0.0, %v794
        %v796 = vpop.f32.mrf.mxu0
        %797 = vdwg.mxu0
        %v802 = vunpack.c.l.b16 %v662
        %v803 = vunpack.c.l.b16 %v663
        %v804 = vunpack.c.l.b16 %v664
        %v805 = vunpack.c.l.b16 %v665
        %v806 = vpack.c.b16 %v803, %v802
        %v807 = vpack.c.b16 %v805, %v804
        %810 = vmatpush.bf16.msra.mxu0 0
        %811 = vmatpush.bf16.msra.mxu0 0
        %812 = vmatpush.bf16.msra.mxu0 0
        %813 = vmatpush.bf16.msra.mxu0 0
        %814 = vmatpush.bf16.msra.mxu0 0
        %815 = vmatpush.bf16.msra.mxu0 0
        %816 = vmatpush.bf16.msra.mxu0 %v807
        %817 = vmatpush.bf16.msra.mxu0 %v806
        %818 = vmatmul.bf16.gmra.mxu0 %v708
        %v819 = vpop.f32.mrf.mxu0
        %v820 = vadd.f32 0.0, %v819
        %v821 = vpop.f32.mrf.mxu0
        %822 = vdwg.mxu0
        %v827 = vunpack.c.l.b16 %v666
        %v828 = vunpack.c.l.b16 %v667
        %v829 = vunpack.c.l.b16 %v668
        %v830 = vunpack.c.l.b16 %v669
        %v831 = vpack.c.b16 %v828, %v827
        %v832 = vpack.c.b16 %v830, %v829
        %835 = vmatpush.bf16.msra.mxu0 0
        %836 = vmatpush.bf16.msra.mxu0 0
        %837 = vmatpush.bf16.msra.mxu0 0
        %838 = vmatpush.bf16.msra.mxu0 0
        %839 = vmatpush.bf16.msra.mxu0 0
        %840 = vmatpush.bf16.msra.mxu0 0
        %841 = vmatpush.bf16.msra.mxu0 %v832
        %842 = vmatpush.bf16.msra.mxu0 %v831
        %843 = vmatmul.bf16.gmra.mxu0 %v708
        %v844 = vpop.f32.mrf.mxu0
        %v845 = vadd.f32 0.0, %v844
        %v846 = vpop.f32.mrf.mxu0
        %847 = vdwg.mxu0
        %v852 = vunpack.c.l.b16 %v670
        %v853 = vunpack.c.l.b16 %v671
        %v854 = vunpack.c.l.b16 %v672
        %v855 = vunpack.c.l.b16 %v673
        %v856 = vpack.c.b16 %v853, %v852
        %v857 = vpack.c.b16 %v855, %v854
        %860 = vmatpush.bf16.msra.mxu0 0
        %861 = vmatpush.bf16.msra.mxu0 0
        %862 = vmatpush.bf16.msra.mxu0 0
        %863 = vmatpush.bf16.msra.mxu0 0
        %864 = vmatpush.bf16.msra.mxu0 0
        %865 = vmatpush.bf16.msra.mxu0 0
        %866 = vmatpush.bf16.msra.mxu0 %v857
        %867 = vmatpush.bf16.msra.mxu0 %v856
        %868 = vmatmul.bf16.gmra.mxu0 %v708
        %v869 = vpop.f32.mrf.mxu0
        %v870 = vadd.f32 0.0, %v869
        %v871 = vpop.f32.mrf.mxu0
        %872 = vdwg.mxu0
        %v877 = vunpack.c.l.b16 %v674
        %v878 = vunpack.c.l.b16 %v675
        %v879 = vunpack.c.l.b16 %v676
        %v880 = vunpack.c.l.b16 %v677
        %v881 = vpack.c.b16 %v878, %v877
        %v882 = vpack.c.b16 %v880, %v879
        %885 = vmatpush.bf16.msra.mxu0 0
        %886 = vmatpush.bf16.msra.mxu0 0
        %887 = vmatpush.bf16.msra.mxu0 0
        %888 = vmatpush.bf16.msra.mxu0 0
        %889 = vmatpush.bf16.msra.mxu0 0
        %890 = vmatpush.bf16.msra.mxu0 0
        %891 = vmatpush.bf16.msra.mxu0 %v882
        %892 = vmatpush.bf16.msra.mxu0 %v881
        %893 = vmatmul.bf16.gmra.mxu0 %v708
        %v894 = vpop.f32.mrf.mxu0
        %v895 = vadd.f32 0.0, %v894
        %v896 = vpop.f32.mrf.mxu0
        %897 = vdwg.mxu0
        %v902 = vunpack.c.l.b16 %v678
        %v903 = vunpack.c.l.b16 %v679
        %v904 = vunpack.c.l.b16 %v680
        %v905 = vunpack.c.l.b16 %v681
        %v906 = vpack.c.b16 %v903, %v902
        %v907 = vpack.c.b16 %v905, %v904
        %910 = vmatpush.bf16.msra.mxu0 0
        %911 = vmatpush.bf16.msra.mxu0 0
        %912 = vmatpush.bf16.msra.mxu0 0
        %913 = vmatpush.bf16.msra.mxu0 0
        %914 = vmatpush.bf16.msra.mxu0 0
        %915 = vmatpush.bf16.msra.mxu0 0
        %916 = vmatpush.bf16.msra.mxu0 %v907
        %917 = vmatpush.bf16.msra.mxu0 %v906
        %918 = vmatmul.bf16.gmra.mxu0 %v708
        %v919 = vpop.f32.mrf.mxu0
        %v920 = vadd.f32 0.0, %v919
        %v921 = vpop.f32.mrf.mxu0
        %922 = vdwg.mxu0
        %v927 = vunpack.c.l.b16 %v682
        %v928 = vunpack.c.l.b16 %v683
        %v929 = vunpack.c.l.b16 %v684
        %v930 = vunpack.c.l.b16 %v685
        %v931 = vpack.c.b16 %v928, %v927
        %v932 = vpack.c.b16 %v930, %v929
        %935 = vmatpush.bf16.msra.mxu0 0
        %936 = vmatpush.bf16.msra.mxu0 0
        %937 = vmatpush.bf16.msra.mxu0 0
        %938 = vmatpush.bf16.msra.mxu0 0
        %939 = vmatpush.bf16.msra.mxu0 0
        %940 = vmatpush.bf16.msra.mxu0 0
        %941 = vmatpush.bf16.msra.mxu0 %v932
        %942 = vmatpush.bf16.msra.mxu0 %v931
        %943 = vmatmul.bf16.gmra.mxu0 %v708
        %v944 = vpop.f32.mrf.mxu0
        %v945 = vadd.f32 0.0, %v944
        %v946 = vpop.f32.mrf.mxu0
        %947 = vdwg.mxu0
        %v952 = vunpack.c.l.b16 %v686
        %v953 = vunpack.c.l.b16 %v687
        %v954 = vunpack.c.l.b16 %v688
        %v955 = vunpack.c.l.b16 %v689
        %v956 = vpack.c.b16 %v953, %v952
        %v957 = vpack.c.b16 %v955, %v954
        %960 = vmatpush.bf16.msra.mxu0 0
        %961 = vmatpush.bf16.msra.mxu0 0
        %962 = vmatpush.bf16.msra.mxu0 0
        %963 = vmatpush.bf16.msra.mxu0 0
        %964 = vmatpush.bf16.msra.mxu0 0
        %965 = vmatpush.bf16.msra.mxu0 0
        %966 = vmatpush.bf16.msra.mxu0 %v957
        %967 = vmatpush.bf16.msra.mxu0 %v956
        %968 = vmatmul.bf16.gmra.mxu0 %v708
        %v969 = vpop.f32.mrf.mxu0
        %v970 = vadd.f32 0.0, %v969
        %v971 = vpop.f32.mrf.mxu0
        %972 = vdwg.mxu0
        %v977 = vunpack.c.l.b16 %v690
        %v978 = vunpack.c.l.b16 %v691
        %v979 = vunpack.c.l.b16 %v692
        %v980 = vunpack.c.l.b16 %v693
        %v981 = vpack.c.b16 %v978, %v977
        %v982 = vpack.c.b16 %v980, %v979
        %985 = vmatpush.bf16.msra.mxu0 0
        %986 = vmatpush.bf16.msra.mxu0 0
        %987 = vmatpush.bf16.msra.mxu0 0
        %988 = vmatpush.bf16.msra.mxu0 0
        %989 = vmatpush.bf16.msra.mxu0 0
        %990 = vmatpush.bf16.msra.mxu0 0
        %991 = vmatpush.bf16.msra.mxu0 %v982
        %992 = vmatpush.bf16.msra.mxu0 %v981
        %993 = vmatmul.bf16.gmra.mxu0 %v708
        %v994 = vpop.f32.mrf.mxu0
        %v995 = vadd.f32 0.0, %v994
        %v996 = vpop.f32.mrf.mxu0
        %997 = vdwg.mxu0
        %v999 = vsel %vm706, %v645, 0
        %1001 = vmatpush.bf16.msra.mxu0 0
        %1002 = vmatpush.bf16.msra.mxu0 0
        %1003 = vmatpush.bf16.msra.mxu0 0
        %1004 = vmatpush.bf16.msra.mxu0 0
        %1005 = vmatpush.bf16.msra.mxu0 0
        %1006 = vmatpush.bf16.msra.mxu0 0
        %1007 = vmatpush.bf16.msra.mxu0 %v703
        %1008 = vmatpush.bf16.msra.mxu0 %v702
        %1009 = vmatmul.bf16.gmra.mxu0 %v999
        %v1010 = vpop.f32.mrf.mxu0
        %v1011 = vadd.f32 0.0, %v1010
        %v1012 = vpop.f32.mrf.mxu0
        %1013 = vdwg.mxu0
        %1014 = vmatpush.bf16.msra.mxu0 0
        %1015 = vmatpush.bf16.msra.mxu0 0
        %1016 = vmatpush.bf16.msra.mxu0 0
        %1017 = vmatpush.bf16.msra.mxu0 0
        %1018 = vmatpush.bf16.msra.mxu0 0
        %1019 = vmatpush.bf16.msra.mxu0 0
        %1020 = vmatpush.bf16.msra.mxu0 %v732
        %1021 = vmatpush.bf16.msra.mxu0 %v731
        %1022 = vmatmul.bf16.gmra.mxu0 %v999
        %v1023 = vpop.f32.mrf.mxu0
        %v1024 = vadd.f32 0.0, %v1023
        %v1025 = vpop.f32.mrf.mxu0
        %1026 = vdwg.mxu0
        %1027 = vmatpush.bf16.msra.mxu0 0
        %1028 = vmatpush.bf16.msra.mxu0 0
        %1029 = vmatpush.bf16.msra.mxu0 0
        %1030 = vmatpush.bf16.msra.mxu0 0
        %1031 = vmatpush.bf16.msra.mxu0 0
        %1032 = vmatpush.bf16.msra.mxu0 0
        %1033 = vmatpush.bf16.msra.mxu0 %v757
        %1034 = vmatpush.bf16.msra.mxu0 %v756
        %1035 = vmatmul.bf16.gmra.mxu0 %v999
        %v1036 = vpop.f32.mrf.mxu0
        %v1037 = vadd.f32 0.0, %v1036
        %v1038 = vpop.f32.mrf.mxu0
        %1039 = vdwg.mxu0
        %1040 = vmatpush.bf16.msra.mxu0 0
        %1041 = vmatpush.bf16.msra.mxu0 0
        %1042 = vmatpush.bf16.msra.mxu0 0
        %1043 = vmatpush.bf16.msra.mxu0 0
        %1044 = vmatpush.bf16.msra.mxu0 0
        %1045 = vmatpush.bf16.msra.mxu0 0
        %1046 = vmatpush.bf16.msra.mxu0 %v782
        %1047 = vmatpush.bf16.msra.mxu0 %v781
        %1048 = vmatmul.bf16.gmra.mxu0 %v999
        %v1049 = vpop.f32.mrf.mxu0
        %v1050 = vadd.f32 0.0, %v1049
        %v1051 = vpop.f32.mrf.mxu0
        %1052 = vdwg.mxu0
        %1053 = vmatpush.bf16.msra.mxu0 0
        %1054 = vmatpush.bf16.msra.mxu0 0
        %1055 = vmatpush.bf16.msra.mxu0 0
        %1056 = vmatpush.bf16.msra.mxu0 0
        %1057 = vmatpush.bf16.msra.mxu0 0
        %1058 = vmatpush.bf16.msra.mxu0 0
        %1059 = vmatpush.bf16.msra.mxu0 %v807
        %1060 = vmatpush.bf16.msra.mxu0 %v806
        %1061 = vmatmul.bf16.gmra.mxu0 %v999
        %v1062 = vpop.f32.mrf.mxu0
        %v1063 = vadd.f32 0.0, %v1062
        %v1064 = vpop.f32.mrf.mxu0
        %1065 = vdwg.mxu0
        %1066 = vmatpush.bf16.msra.mxu0 0
        %1067 = vmatpush.bf16.msra.mxu0 0
        %1068 = vmatpush.bf16.msra.mxu0 0
        %1069 = vmatpush.bf16.msra.mxu0 0
        %1070 = vmatpush.bf16.msra.mxu0 0
        %1071 = vmatpush.bf16.msra.mxu0 0
        %1072 = vmatpush.bf16.msra.mxu0 %v832
        %1073 = vmatpush.bf16.msra.mxu0 %v831
        %1074 = vmatmul.bf16.gmra.mxu0 %v999
        %v1075 = vpop.f32.mrf.mxu0
        %v1076 = vadd.f32 0.0, %v1075
        %v1077 = vpop.f32.mrf.mxu0
        %1078 = vdwg.mxu0
        %1079 = vmatpush.bf16.msra.mxu0 0
        %1080 = vmatpush.bf16.msra.mxu0 0
        %1081 = vmatpush.bf16.msra.mxu0 0
        %1082 = vmatpush.bf16.msra.mxu0 0
        %1083 = vmatpush.bf16.msra.mxu0 0
        %1084 = vmatpush.bf16.msra.mxu0 0
        %1085 = vmatpush.bf16.msra.mxu0 %v857
        %1086 = vmatpush.bf16.msra.mxu0 %v856
        %1087 = vmatmul.bf16.gmra.mxu0 %v999
        %v1088 = vpop.f32.mrf.mxu0
        %v1089 = vadd.f32 0.0, %v1088
        %v1090 = vpop.f32.mrf.mxu0
        %1091 = vdwg.mxu0
        %1092 = vmatpush.bf16.msra.mxu0 0
        %1093 = vmatpush.bf16.msra.mxu0 0
        %1094 = vmatpush.bf16.msra.mxu0 0
        %1095 = vmatpush.bf16.msra.mxu0 0
        %1096 = vmatpush.bf16.msra.mxu0 0
        %1097 = vmatpush.bf16.msra.mxu0 0
        %1098 = vmatpush.bf16.msra.mxu0 %v882
        %1099 = vmatpush.bf16.msra.mxu0 %v881
        %1100 = vmatmul.bf16.gmra.mxu0 %v999
        %v1101 = vpop.f32.mrf.mxu0
        %v1102 = vadd.f32 0.0, %v1101
        %v1103 = vpop.f32.mrf.mxu0
        %1104 = vdwg.mxu0
        %1105 = vmatpush.bf16.msra.mxu0 0
        %1106 = vmatpush.bf16.msra.mxu0 0
        %1107 = vmatpush.bf16.msra.mxu0 0
        %1108 = vmatpush.bf16.msra.mxu0 0
        %1109 = vmatpush.bf16.msra.mxu0 0
        %1110 = vmatpush.bf16.msra.mxu0 0
        %1111 = vmatpush.bf16.msra.mxu0 %v907
        %1112 = vmatpush.bf16.msra.mxu0 %v906
        %1113 = vmatmul.bf16.gmra.mxu0 %v999
        %v1114 = vpop.f32.mrf.mxu0
        %v1115 = vadd.f32 0.0, %v1114
        %v1116 = vpop.f32.mrf.mxu0
        %1117 = vdwg.mxu0
        %1118 = vmatpush.bf16.msra.mxu0 0
        %1119 = vmatpush.bf16.msra.mxu0 0
        %1120 = vmatpush.bf16.msra.mxu0 0
        %1121 = vmatpush.bf16.msra.mxu0 0
        %1122 = vmatpush.bf16.msra.mxu0 0
        %1123 = vmatpush.bf16.msra.mxu0 0
        %1124 = vmatpush.bf16.msra.mxu0 %v932
        %1125 = vmatpush.bf16.msra.mxu0 %v931
        %1126 = vmatmul.bf16.gmra.mxu0 %v999
        %v1127 = vpop.f32.mrf.mxu0
        %v1128 = vadd.f32 0.0, %v1127
        %v1129 = vpop.f32.mrf.mxu0
        %1130 = vdwg.mxu0
        %1131 = vmatpush.bf16.msra.mxu0 0
        %1132 = vmatpush.bf16.msra.mxu0 0
        %1133 = vmatpush.bf16.msra.mxu0 0
        %1134 = vmatpush.bf16.msra.mxu0 0
        %1135 = vmatpush.bf16.msra.mxu0 0
        %1136 = vmatpush.bf16.msra.mxu0 0
        %1137 = vmatpush.bf16.msra.mxu0 %v957
        %1138 = vmatpush.bf16.msra.mxu0 %v956
        %1139 = vmatmul.bf16.gmra.mxu0 %v999
        %v1140 = vpop.f32.mrf.mxu0
        %v1141 = vadd.f32 0.0, %v1140
        %v1142 = vpop.f32.mrf.mxu0
        %1143 = vdwg.mxu0
        %1144 = vmatpush.bf16.msra.mxu0 0
        %1145 = vmatpush.bf16.msra.mxu0 0
        %1146 = vmatpush.bf16.msra.mxu0 0
        %1147 = vmatpush.bf16.msra.mxu0 0
        %1148 = vmatpush.bf16.msra.mxu0 0
        %1149 = vmatpush.bf16.msra.mxu0 0
        %1150 = vmatpush.bf16.msra.mxu0 %v982
        %1151 = vmatpush.bf16.msra.mxu0 %v981
        %1152 = vmatmul.bf16.gmra.mxu0 %v999
        %v1153 = vpop.f32.mrf.mxu0
        %v1154 = vadd.f32 0.0, %v1153
        %v1155 = vpop.f32.mrf.mxu0
        %1156 = vdwg.mxu0
        %v1157 = vld [vmem:[%s595] sm:$0xff]
        %v1158 = vld [vmem:[%s595 + $0x8] sm:$0xf]
        %v1161 = vrot.slane %v1157, 1
        %v1162 = vrot.slane %v1157, 2
        %v1163 = vrot.slane %v1157, 3
        %v1164 = vrot.slane %v1157, 4
        %v1165 = vrot.slane %v1157, 5
        %v1166 = vrot.slane %v1157, 6
        %v1167 = vrot.slane %v1157, 7
        %v1168 = vrot.slane %v1158, 1
        %v1169 = vrot.slane %v1158, 2
        %v1170 = vrot.slane %v1158, 3
        %v1171 = vperm.slane %v1157, 0
        %v1172 = vperm.slane %v1161, 0
        %v1173 = vperm.slane %v1162, 0
        %v1174 = vperm.slane %v1163, 0
        %v1175 = vperm.slane %v1164, 0
        %v1176 = vperm.slane %v1165, 0
        %v1177 = vperm.slane %v1166, 0
        %v1178 = vperm.slane %v1167, 0
        %v1179 = vperm.slane %v1158, 0
        %v1180 = vperm.slane %v1168, 0
        %v1181 = vperm.slane %v1169, 0
        %v1182 = vperm.slane %v1170, 0
        %v1195 = vadd.f32 %v720, %v1171
        %v1196 = vadd.f32 %v745, %v1172
        %v1197 = vadd.f32 %v770, %v1173
        %v1198 = vadd.f32 %v795, %v1174
        %v1199 = vadd.f32 %v820, %v1175
        %v1200 = vadd.f32 %v845, %v1176
        %v1201 = vadd.f32 %v870, %v1177
        %v1202 = vadd.f32 %v895, %v1178
        %v1203 = vadd.f32 %v920, %v1179
        %v1204 = vadd.f32 %v945, %v1180
        %v1205 = vadd.f32 %v970, %v1181
        %v1206 = vadd.f32 %v995, %v1182
        %v1207 = vadd.f32 %v1011, %v1171
        %v1208 = vadd.f32 %v1024, %v1172
        %v1209 = vadd.f32 %v1037, %v1173
        %v1210 = vadd.f32 %v1050, %v1174
        %v1211 = vadd.f32 %v1063, %v1175
        %v1212 = vadd.f32 %v1076, %v1176
        %v1213 = vadd.f32 %v1089, %v1177
        %v1214 = vadd.f32 %v1102, %v1178
        %v1215 = vadd.f32 %v1115, %v1179
        %v1216 = vadd.f32 %v1128, %v1180
        %v1217 = vadd.f32 %v1141, %v1181
        %v1218 = vadd.f32 %v1154, %v1182
        %v1219 = vpack.c.bf16 %v1195, %v1195
        %v1220 = vpack.c.bf16 %v1196, %v1196
        %v1221 = vpack.c.bf16 %v1197, %v1197
        %v1222 = vpack.c.bf16 %v1198, %v1198
        %v1223 = vpack.c.bf16 %v1207, %v1207
        %v1224 = vpack.c.bf16 %v1208, %v1208
        %v1225 = vpack.c.bf16 %v1209, %v1209
        %v1226 = vpack.c.bf16 %v1210, %v1210
        %v1227 = vpack.c.bf16 %v1199, %v1199
        %v1228 = vpack.c.bf16 %v1200, %v1200
        %v1229 = vpack.c.bf16 %v1201, %v1201
        %v1230 = vpack.c.bf16 %v1202, %v1202
        %v1231 = vpack.c.bf16 %v1211, %v1211
        %v1232 = vpack.c.bf16 %v1212, %v1212
        %v1233 = vpack.c.bf16 %v1213, %v1213
        %v1234 = vpack.c.bf16 %v1214, %v1214
        %v1235 = vpack.c.bf16 %v1203, %v1203
        %v1236 = vpack.c.bf16 %v1204, %v1204
        %v1237 = vpack.c.bf16 %v1205, %v1205
        %v1238 = vpack.c.bf16 %v1206, %v1206
        %v1239 = vpack.c.bf16 %v1215, %v1215
        %v1240 = vpack.c.bf16 %v1216, %v1216
        %v1241 = vpack.c.bf16 %v1217, %v1217
        %v1242 = vpack.c.bf16 %v1218, %v1218
        %vm1243 = vcmask 64512
        %v1245 = vsel %vm1243, %v1219, 0
        %v1248 = vsel %vm1243, %v1227, 0
        %1250 = vmatpush.bf16.xpose.msra.mxu0 0
        %1251 = vmatpush.bf16.xpose.msra.mxu0 0
        %1252 = vmatpush.bf16.xpose.msra.mxu0 0
        %1253 = vmatpush.bf16.xpose.msra.mxu0 0
        %1254 = vmatpush.bf16.xpose.msra.mxu0 0
        %1255 = vmatpush.bf16.xpose.msra.mxu0 0
        %1256 = vmatpush.bf16.xpose.msra.mxu0 0
        %1257 = vmatpush.bf16.xpose.msra.mxu0 %v1248
        %1258 = vmatmul.bf16.gmra.mxu0 %v1245
        %v1259 = vpop.f32.mrf.mxu0
        %v1260 = vadd.f32 0.0, %v1259
        %v1261 = vpop.f32.mrf.mxu0
        %1262 = vdwg.mxu0
        %v1264 = vsel %vm1243, %v1220, 0
        %v1267 = vsel %vm1243, %v1228, 0
        %1269 = vmatpush.bf16.xpose.msra.mxu0 0
        %1270 = vmatpush.bf16.xpose.msra.mxu0 0
        %1271 = vmatpush.bf16.xpose.msra.mxu0 0
        %1272 = vmatpush.bf16.xpose.msra.mxu0 0
        %1273 = vmatpush.bf16.xpose.msra.mxu0 0
        %1274 = vmatpush.bf16.xpose.msra.mxu0 0
        %1275 = vmatpush.bf16.xpose.msra.mxu0 0
        %1276 = vmatpush.bf16.xpose.msra.mxu0 %v1267
        %1277 = vmatmul.bf16.gmra.mxu0 %v1264
        %v1278 = vpop.f32.mrf.mxu0
        %v1279 = vadd.f32 0.0, %v1278
        %v1280 = vpop.f32.mrf.mxu0
        %1281 = vdwg.mxu0
        %v1283 = vsel %vm1243, %v1221, 0
        %v1286 = vsel %vm1243, %v1229, 0
        %1288 = vmatpush.bf16.xpose.msra.mxu0 0
        %1289 = vmatpush.bf16.xpose.msra.mxu0 0
        %1290 = vmatpush.bf16.xpose.msra.mxu0 0
        %1291 = vmatpush.bf16.xpose.msra.mxu0 0
        %1292 = vmatpush.bf16.xpose.msra.mxu0 0
        %1293 = vmatpush.bf16.xpose.msra.mxu0 0
        %1294 = vmatpush.bf16.xpose.msra.mxu0 0
        %1295 = vmatpush.bf16.xpose.msra.mxu0 %v1286
        %1296 = vmatmul.bf16.gmra.mxu0 %v1283
        %v1297 = vpop.f32.mrf.mxu0
        %v1298 = vadd.f32 0.0, %v1297
        %v1299 = vpop.f32.mrf.mxu0
        %1300 = vdwg.mxu0
        %v1302 = vsel %vm1243, %v1222, 0
        %v1305 = vsel %vm1243, %v1230, 0
        %1307 = vmatpush.bf16.xpose.msra.mxu0 0
        %1308 = vmatpush.bf16.xpose.msra.mxu0 0
        %1309 = vmatpush.bf16.xpose.msra.mxu0 0
        %1310 = vmatpush.bf16.xpose.msra.mxu0 0
        %1311 = vmatpush.bf16.xpose.msra.mxu0 0
        %1312 = vmatpush.bf16.xpose.msra.mxu0 0
        %1313 = vmatpush.bf16.xpose.msra.mxu0 0
        %1314 = vmatpush.bf16.xpose.msra.mxu0 %v1305
        %1315 = vmatmul.bf16.gmra.mxu0 %v1302
        %v1316 = vpop.f32.mrf.mxu0
        %v1317 = vadd.f32 0.0, %v1316
        %v1318 = vpop.f32.mrf.mxu0
        %1319 = vdwg.mxu0
        %v1321 = vsel %vm1243, %v1223, 0
        %v1324 = vsel %vm1243, %v1231, 0
        %1326 = vmatpush.bf16.xpose.msra.mxu0 0
        %1327 = vmatpush.bf16.xpose.msra.mxu0 0
        %1328 = vmatpush.bf16.xpose.msra.mxu0 0
        %1329 = vmatpush.bf16.xpose.msra.mxu0 0
        %1330 = vmatpush.bf16.xpose.msra.mxu0 0
        %1331 = vmatpush.bf16.xpose.msra.mxu0 0
        %1332 = vmatpush.bf16.xpose.msra.mxu0 0
        %1333 = vmatpush.bf16.xpose.msra.mxu0 %v1324
        %1334 = vmatmul.bf16.gmra.mxu0 %v1321
        %v1335 = vpop.f32.mrf.mxu0
        %v1336 = vadd.f32 0.0, %v1335
        %v1337 = vpop.f32.mrf.mxu0
        %1338 = vdwg.mxu0
        %v1340 = vsel %vm1243, %v1224, 0
        %v1343 = vsel %vm1243, %v1232, 0
        %1345 = vmatpush.bf16.xpose.msra.mxu0 0
        %1346 = vmatpush.bf16.xpose.msra.mxu0 0
        %1347 = vmatpush.bf16.xpose.msra.mxu0 0
        %1348 = vmatpush.bf16.xpose.msra.mxu0 0
        %1349 = vmatpush.bf16.xpose.msra.mxu0 0
        %1350 = vmatpush.bf16.xpose.msra.mxu0 0
        %1351 = vmatpush.bf16.xpose.msra.mxu0 0
        %1352 = vmatpush.bf16.xpose.msra.mxu0 %v1343
        %1353 = vmatmul.bf16.gmra.mxu0 %v1340
        %v1354 = vpop.f32.mrf.mxu0
        %v1355 = vadd.f32 0.0, %v1354
        %v1356 = vpop.f32.mrf.mxu0
        %1357 = vdwg.mxu0
        %v1359 = vsel %vm1243, %v1225, 0
        %v1362 = vsel %vm1243, %v1233, 0
        %1364 = vmatpush.bf16.xpose.msra.mxu0 0
        %1365 = vmatpush.bf16.xpose.msra.mxu0 0
        %1366 = vmatpush.bf16.xpose.msra.mxu0 0
        %1367 = vmatpush.bf16.xpose.msra.mxu0 0
        %1368 = vmatpush.bf16.xpose.msra.mxu0 0
        %1369 = vmatpush.bf16.xpose.msra.mxu0 0
        %1370 = vmatpush.bf16.xpose.msra.mxu0 0
        %1371 = vmatpush.bf16.xpose.msra.mxu0 %v1362
        %1372 = vmatmul.bf16.gmra.mxu0 %v1359
        %v1373 = vpop.f32.mrf.mxu0
        %v1374 = vadd.f32 0.0, %v1373
        %v1375 = vpop.f32.mrf.mxu0
        %1376 = vdwg.mxu0
        %v1378 = vsel %vm1243, %v1226, 0
        %v1381 = vsel %vm1243, %v1234, 0
        %1383 = vmatpush.bf16.xpose.msra.mxu0 0
        %1384 = vmatpush.bf16.xpose.msra.mxu0 0
        %1385 = vmatpush.bf16.xpose.msra.mxu0 0
        %1386 = vmatpush.bf16.xpose.msra.mxu0 0
        %1387 = vmatpush.bf16.xpose.msra.mxu0 0
        %1388 = vmatpush.bf16.xpose.msra.mxu0 0
        %1389 = vmatpush.bf16.xpose.msra.mxu0 0
        %1390 = vmatpush.bf16.xpose.msra.mxu0 %v1381
        %1391 = vmatmul.bf16.gmra.mxu0 %v1378
        %v1392 = vpop.f32.mrf.mxu0
        %v1393 = vadd.f32 0.0, %v1392
        %v1394 = vpop.f32.mrf.mxu0
        %1395 = vdwg.mxu0
        %v1396 = vmul.f32 %v1260, 0.35355338
        %v1397 = vmul.f32 %v1279, 0.35355338
        %v1398 = vmul.f32 %v1298, 0.35355338
        %v1399 = vmul.f32 %v1317, 0.35355338
        %v1400 = vmul.f32 %v1336, 0.35355338
        %v1401 = vmul.f32 %v1355, 0.35355338
        %v1402 = vmul.f32 %v1374, 0.35355338
        %v1403 = vmul.f32 %v1393, 0.35355338
        %v1404 = vld [vmem:[%s1] sm:$0x3]
        %v1406 = vrot.slane %v1404, 1
        %v1407 = vperm.slane %v1404, 0
        %v1408 = vperm.slane %v1406, 0
        %v1411 = vadd.f32 %v1396, %v1407
        %v1412 = vadd.f32 %v1397, %v1407
        %v1413 = vadd.f32 %v1398, %v1407
        %v1414 = vadd.f32 %v1399, %v1407
        %v1415 = vadd.f32 %v1400, %v1408
        %v1416 = vadd.f32 %v1401, %v1408
        %v1417 = vadd.f32 %v1402, %v1408
        %v1418 = vadd.f32 %v1403, %v1408
        %v1419 = vsel %vm1243, %v1411, -inf
        %1420 = vmax.xlane.f32.xlu0 %v1419
        %v1421 = vpop.xlane.xlu0 %1420
        %v1422 = vsel %vm1243, %v1412, -inf
        %1423 = vmax.xlane.f32.xlu0 %v1422
        %v1424 = vpop.xlane.xlu0 %1423
        %v1425 = vsel %vm1243, %v1413, -inf
        %1426 = vmax.xlane.f32.xlu0 %v1425
        %v1427 = vpop.xlane.xlu0 %1426
        %v1428 = vsel %vm1243, %v1414, -inf
        %1429 = vmax.xlane.f32.xlu0 %v1428
        %v1430 = vpop.xlane.xlu0 %1429
        %v1431 = vsel %vm1243, %v1415, -inf
        %1432 = vmax.xlane.f32.xlu0 %v1431
        %v1433 = vpop.xlane.xlu0 %1432
        %v1434 = vsel %vm1243, %v1416, -inf
        %1435 = vmax.xlane.f32.xlu0 %v1434
        %v1436 = vpop.xlane.xlu0 %1435
        %v1437 = vsel %vm1243, %v1417, -inf
        %1438 = vmax.xlane.f32.xlu0 %v1437
        %v1439 = vpop.xlane.xlu0 %1438
        %v1440 = vsel %vm1243, %v1418, -inf
        %1441 = vmax.xlane.f32.xlu0 %v1440
        %v1442 = vpop.xlane.xlu0 %1441
        %v1443 = vsub.f32 %v1411, %v1421
        %v1444 = vsub.f32 %v1412, %v1424
        %v1445 = vsub.f32 %v1413, %v1427
        %v1446 = vsub.f32 %v1414, %v1430
        %v1447 = vsub.f32 %v1415, %v1433
        %v1448 = vsub.f32 %v1416, %v1436
        %v1449 = vsub.f32 %v1417, %v1439
        %v1450 = vsub.f32 %v1418, %v1442
        %v1451 = vmul.f32 %v1443, 1.442695
        %v1452 = vpow.pop %v1451
        %v1453 = vmul.f32 %v1444, 1.442695
        %v1454 = vpow.pop %v1453
        %v1455 = vmul.f32 %v1445, 1.442695
        %v1456 = vpow.pop %v1455
        %v1457 = vmul.f32 %v1446, 1.442695
        %v1458 = vpow.pop %v1457
        %v1459 = vmul.f32 %v1447, 1.442695
        %v1460 = vpow.pop %v1459
        %v1461 = vmul.f32 %v1448, 1.442695
        %v1462 = vpow.pop %v1461
        %v1463 = vmul.f32 %v1449, 1.442695
        %v1464 = vpow.pop %v1463
        %v1465 = vmul.f32 %v1450, 1.442695
        %v1466 = vpow.pop %v1465
        %v1467 = vsel %vm1243, %v1452, 0.0
        %1468 = vadd.xlane.f32.xlu0 %v1467
        %v1469 = vpop.xlane.xlu0 %1468
        %v1470 = vsel %vm1243, %v1454, 0.0
        %1471 = vadd.xlane.f32.xlu0 %v1470
        %v1472 = vpop.xlane.xlu0 %1471
        %v1473 = vsel %vm1243, %v1456, 0.0
        %1474 = vadd.xlane.f32.xlu0 %v1473
        %v1475 = vpop.xlane.xlu0 %1474
        %v1476 = vsel %vm1243, %v1458, 0.0
        %1477 = vadd.xlane.f32.xlu0 %v1476
        %v1478 = vpop.xlane.xlu0 %1477
        %v1479 = vsel %vm1243, %v1460, 0.0
        %1480 = vadd.xlane.f32.xlu0 %v1479
        %v1481 = vpop.xlane.xlu0 %1480
        %v1482 = vsel %vm1243, %v1462, 0.0
        %1483 = vadd.xlane.f32.xlu0 %v1482
        %v1484 = vpop.xlane.xlu0 %1483
        %v1485 = vsel %vm1243, %v1464, 0.0
        %1486 = vadd.xlane.f32.xlu0 %v1485
        %v1487 = vpop.xlane.xlu0 %1486
        %v1488 = vsel %vm1243, %v1466, 0.0
        %1489 = vadd.xlane.f32.xlu0 %v1488
        %v1490 = vpop.xlane.xlu0 %1489
        %v1491 = vrcp.pop %v1469
        %v1492 = vrcp.pop %v1472
        %v1493 = vrcp.pop %v1475
        %v1494 = vrcp.pop %v1478
        %v1495 = vrcp.pop %v1481
        %v1496 = vrcp.pop %v1484
        %v1497 = vrcp.pop %v1487
        %v1498 = vrcp.pop %v1490
        %v1499 = vmul.f32 %v1452, %v1491
        %v1500 = vmul.f32 %v1454, %v1492
        %v1501 = vmul.f32 %v1456, %v1493
        %v1502 = vmul.f32 %v1458, %v1494
        %v1503 = vmul.f32 %v1460, %v1495
        %v1504 = vmul.f32 %v1462, %v1496
        %v1505 = vmul.f32 %v1464, %v1497
        %v1506 = vmul.f32 %v1466, %v1498
        %v1507 = vpack.c.bf16 %v1499, %v1499
        %v1508 = vpack.c.bf16 %v1500, %v1500
        %v1509 = vpack.c.bf16 %v1501, %v1501
        %v1510 = vpack.c.bf16 %v1502, %v1502
        %v1511 = vpack.c.bf16 %v1503, %v1503
        %v1512 = vpack.c.bf16 %v1504, %v1504
        %v1513 = vpack.c.bf16 %v1505, %v1505
        %v1514 = vpack.c.bf16 %v1506, %v1506
        %v1516 = vsel %vm1243, %v1507, 0
        %vm1518 = vcmask 1043456
        %v1520 = vsel %vm1518, %v1235, 0
        %1522 = vmatpush.bf16.msra.mxu0 0
        %1523 = vmatpush.bf16.msra.mxu0 0
        %1524 = vmatpush.bf16.msra.mxu0 0
        %1525 = vmatpush.bf16.msra.mxu0 0
        %1526 = vmatpush.bf16.msra.mxu0 0
        %1527 = vmatpush.bf16.msra.mxu0 0
        %1528 = vmatpush.bf16.msra.mxu0 0
        %1529 = vmatpush.bf16.msra.mxu0 %v1520
        %1530 = vmatmul.bf16.gmra.mxu0 %v1516
        %v1531 = vpop.f32.mrf.mxu0
        %v1532 = vadd.f32 0.0, %v1531
        %v1533 = vpop.f32.mrf.mxu0
        %1534 = vdwg.mxu0
        %v1536 = vsel %vm1243, %v1508, 0
        %v1539 = vsel %vm1518, %v1236, 0
        %1541 = vmatpush.bf16.msra.mxu0 0
        %1542 = vmatpush.bf16.msra.mxu0 0
        %1543 = vmatpush.bf16.msra.mxu0 0
        %1544 = vmatpush.bf16.msra.mxu0 0
        %1545 = vmatpush.bf16.msra.mxu0 0
        %1546 = vmatpush.bf16.msra.mxu0 0
        %1547 = vmatpush.bf16.msra.mxu0 0
        %1548 = vmatpush.bf16.msra.mxu0 %v1539
        %1549 = vmatmul.bf16.gmra.mxu0 %v1536
        %v1550 = vpop.f32.mrf.mxu0
        %v1551 = vadd.f32 0.0, %v1550
        %v1552 = vpop.f32.mrf.mxu0
        %1553 = vdwg.mxu0
        %v1555 = vsel %vm1243, %v1509, 0
        %v1558 = vsel %vm1518, %v1237, 0
        %1560 = vmatpush.bf16.msra.mxu0 0
        %1561 = vmatpush.bf16.msra.mxu0 0
        %1562 = vmatpush.bf16.msra.mxu0 0
        %1563 = vmatpush.bf16.msra.mxu0 0
        %1564 = vmatpush.bf16.msra.mxu0 0
        %1565 = vmatpush.bf16.msra.mxu0 0
        %1566 = vmatpush.bf16.msra.mxu0 0
        %1567 = vmatpush.bf16.msra.mxu0 %v1558
        %1568 = vmatmul.bf16.gmra.mxu0 %v1555
        %v1569 = vpop.f32.mrf.mxu0
        %v1570 = vadd.f32 0.0, %v1569
        %v1571 = vpop.f32.mrf.mxu0
        %1572 = vdwg.mxu0
        %v1574 = vsel %vm1243, %v1510, 0
        %v1577 = vsel %vm1518, %v1238, 0
        %1579 = vmatpush.bf16.msra.mxu0 0
        %1580 = vmatpush.bf16.msra.mxu0 0
        %1581 = vmatpush.bf16.msra.mxu0 0
        %1582 = vmatpush.bf16.msra.mxu0 0
        %1583 = vmatpush.bf16.msra.mxu0 0
        %1584 = vmatpush.bf16.msra.mxu0 0
        %1585 = vmatpush.bf16.msra.mxu0 0
        %1586 = vmatpush.bf16.msra.mxu0 %v1577
        %1587 = vmatmul.bf16.gmra.mxu0 %v1574
        %v1588 = vpop.f32.mrf.mxu0
        %v1589 = vadd.f32 0.0, %v1588
        %v1590 = vpop.f32.mrf.mxu0
        %1591 = vdwg.mxu0
        %v1593 = vsel %vm1243, %v1511, 0
        %v1596 = vsel %vm1518, %v1239, 0
        %1598 = vmatpush.bf16.msra.mxu0 0
        %1599 = vmatpush.bf16.msra.mxu0 0
        %1600 = vmatpush.bf16.msra.mxu0 0
        %1601 = vmatpush.bf16.msra.mxu0 0
        %1602 = vmatpush.bf16.msra.mxu0 0
        %1603 = vmatpush.bf16.msra.mxu0 0
        %1604 = vmatpush.bf16.msra.mxu0 0
        %1605 = vmatpush.bf16.msra.mxu0 %v1596
        %1606 = vmatmul.bf16.gmra.mxu0 %v1593
        %v1607 = vpop.f32.mrf.mxu0
        %v1608 = vadd.f32 0.0, %v1607
        %v1609 = vpop.f32.mrf.mxu0
        %1610 = vdwg.mxu0
        %v1612 = vsel %vm1243, %v1512, 0
        %v1615 = vsel %vm1518, %v1240, 0
        %1617 = vmatpush.bf16.msra.mxu0 0
        %1618 = vmatpush.bf16.msra.mxu0 0
        %1619 = vmatpush.bf16.msra.mxu0 0
        %1620 = vmatpush.bf16.msra.mxu0 0
        %1621 = vmatpush.bf16.msra.mxu0 0
        %1622 = vmatpush.bf16.msra.mxu0 0
        %1623 = vmatpush.bf16.msra.mxu0 0
        %1624 = vmatpush.bf16.msra.mxu0 %v1615
        %1625 = vmatmul.bf16.gmra.mxu0 %v1612
        %v1626 = vpop.f32.mrf.mxu0
        %v1627 = vadd.f32 0.0, %v1626
        %v1628 = vpop.f32.mrf.mxu0
        %1629 = vdwg.mxu0
        %v1631 = vsel %vm1243, %v1513, 0
        %v1634 = vsel %vm1518, %v1241, 0
        %1636 = vmatpush.bf16.msra.mxu0 0
        %1637 = vmatpush.bf16.msra.mxu0 0
        %1638 = vmatpush.bf16.msra.mxu0 0
        %1639 = vmatpush.bf16.msra.mxu0 0
        %1640 = vmatpush.bf16.msra.mxu0 0
        %1641 = vmatpush.bf16.msra.mxu0 0
        %1642 = vmatpush.bf16.msra.mxu0 0
        %1643 = vmatpush.bf16.msra.mxu0 %v1634
        %1644 = vmatmul.bf16.gmra.mxu0 %v1631
        %v1645 = vpop.f32.mrf.mxu0
        %v1646 = vadd.f32 0.0, %v1645
        %v1647 = vpop.f32.mrf.mxu0
        %1648 = vdwg.mxu0
        %v1650 = vsel %vm1243, %v1514, 0
        %v1653 = vsel %vm1518, %v1242, 0
        %1655 = vmatpush.bf16.msra.mxu0 0
        %1656 = vmatpush.bf16.msra.mxu0 0
        %1657 = vmatpush.bf16.msra.mxu0 0
        %1658 = vmatpush.bf16.msra.mxu0 0
        %1659 = vmatpush.bf16.msra.mxu0 0
        %1660 = vmatpush.bf16.msra.mxu0 0
        %1661 = vmatpush.bf16.msra.mxu0 0
        %1662 = vmatpush.bf16.msra.mxu0 %v1653
        %1663 = vmatmul.bf16.gmra.mxu0 %v1650
        %v1664 = vpop.f32.mrf.mxu0
        %v1665 = vadd.f32 0.0, %v1664
        %v1666 = vpop.f32.mrf.mxu0
        %1667 = vdwg.mxu0
        %v1668 = vld [vmem:[%s600] sm:$0xf]
        %v1669 = vld [vmem:[%s600 + $0x4] sm:$0xf]
        %v1670 = vld [vmem:[%s600 + $0x8] sm:$0xf]
        %v1671 = vld [vmem:[%s600 + $0xc] sm:$0xf]
        %v1672 = vpack.c.bf16 %v1532, %v1532
        %v1673 = vpack.c.bf16 %v1551, %v1551
        %v1674 = vpack.c.bf16 %v1570, %v1570
        %v1675 = vpack.c.bf16 %v1589, %v1589
        %v1676 = vpack.c.bf16 %v1608, %v1608
        %v1677 = vpack.c.bf16 %v1627, %v1627
        %v1678 = vpack.c.bf16 %v1646, %v1646
        %v1679 = vpack.c.bf16 %v1665, %v1665
        %v1681 = vsel %vm1243, %v1672, 0
        %v1684 = vsel %vm1518, %v1668, 0
        %1686 = vmatpush.bf16.msra.mxu0 0
        %1687 = vmatpush.bf16.msra.mxu0 0
        %1688 = vmatpush.bf16.msra.mxu0 0
        %1689 = vmatpush.bf16.msra.mxu0 0
        %1690 = vmatpush.bf16.msra.mxu0 0
        %1691 = vmatpush.bf16.msra.mxu0 0
        %1692 = vmatpush.bf16.msra.mxu0 0
        %1693 = vmatpush.bf16.msra.mxu0 %v1684
        %1694 = vmatmul.bf16.gmra.mxu0 %v1681
        %v1695 = vpop.f32.mrf.mxu0
        %v1696 = vadd.f32 0.0, %v1695
        %v1697 = vpop.f32.mrf.mxu0
        %1698 = vdwg.mxu0
        %v1700 = vsel %vm1243, %v1673, 0
        %v1703 = vsel %vm1518, %v1669, 0
        %1705 = vmatpush.bf16.msra.mxu0 0
        %1706 = vmatpush.bf16.msra.mxu0 0
        %1707 = vmatpush.bf16.msra.mxu0 0
        %1708 = vmatpush.bf16.msra.mxu0 0
        %1709 = vmatpush.bf16.msra.mxu0 0
        %1710 = vmatpush.bf16.msra.mxu0 0
        %1711 = vmatpush.bf16.msra.mxu0 0
        %1712 = vmatpush.bf16.msra.mxu0 %v1703
        %1713 = vmatmul.bf16.gmra.mxu0 %v1700
        %v1714 = vpop.f32.mrf.mxu0
        %v1715 = vadd.f32 0.0, %v1714
        %v1716 = vpop.f32.mrf.mxu0
        %1717 = vdwg.mxu0
        %v1719 = vsel %vm1243, %v1674, 0
        %v1722 = vsel %vm1518, %v1670, 0
        %1724 = vmatpush.bf16.msra.mxu0 0
        %1725 = vmatpush.bf16.msra.mxu0 0
        %1726 = vmatpush.bf16.msra.mxu0 0
        %1727 = vmatpush.bf16.msra.mxu0 0
        %1728 = vmatpush.bf16.msra.mxu0 0
        %1729 = vmatpush.bf16.msra.mxu0 0
        %1730 = vmatpush.bf16.msra.mxu0 0
        %1731 = vmatpush.bf16.msra.mxu0 %v1722
        %1732 = vmatmul.bf16.gmra.mxu0 %v1719
        %v1733 = vpop.f32.mrf.mxu0
        %v1734 = vadd.f32 0.0, %v1733
        %v1735 = vpop.f32.mrf.mxu0
        %1736 = vdwg.mxu0
        %v1738 = vsel %vm1243, %v1675, 0
        %v1741 = vsel %vm1518, %v1671, 0
        %1743 = vmatpush.bf16.msra.mxu0 0
        %1744 = vmatpush.bf16.msra.mxu0 0
        %1745 = vmatpush.bf16.msra.mxu0 0
        %1746 = vmatpush.bf16.msra.mxu0 0
        %1747 = vmatpush.bf16.msra.mxu0 0
        %1748 = vmatpush.bf16.msra.mxu0 0
        %1749 = vmatpush.bf16.msra.mxu0 0
        %1750 = vmatpush.bf16.msra.mxu0 %v1741
        %1751 = vmatmul.bf16.gmra.mxu0 %v1738
        %v1752 = vpop.f32.mrf.mxu0
        %v1753 = vadd.f32 0.0, %v1752
        %v1754 = vpop.f32.mrf.mxu0
        %1755 = vdwg.mxu0
        %v1757 = vsel %vm1243, %v1676, 0
        %1759 = vmatpush.bf16.msra.mxu0 0
        %1760 = vmatpush.bf16.msra.mxu0 0
        %1761 = vmatpush.bf16.msra.mxu0 0
        %1762 = vmatpush.bf16.msra.mxu0 0
        %1763 = vmatpush.bf16.msra.mxu0 0
        %1764 = vmatpush.bf16.msra.mxu0 0
        %1765 = vmatpush.bf16.msra.mxu0 0
        %1766 = vmatpush.bf16.msra.mxu0 %v1684
        %1767 = vmatmul.bf16.gmra.mxu0 %v1757
        %v1768 = vpop.f32.mrf.mxu0
        %v1769 = vadd.f32 0.0, %v1768
        %v1770 = vpop.f32.mrf.mxu0
        %1771 = vdwg.mxu0
        %v1773 = vsel %vm1243, %v1677, 0
        %1775 = vmatpush.bf16.msra.mxu0 0
        %1776 = vmatpush.bf16.msra.mxu0 0
        %1777 = vmatpush.bf16.msra.mxu0 0
        %1778 = vmatpush.bf16.msra.mxu0 0
        %1779 = vmatpush.bf16.msra.mxu0 0
        %1780 = vmatpush.bf16.msra.mxu0 0
        %1781 = vmatpush.bf16.msra.mxu0 0
        %1782 = vmatpush.bf16.msra.mxu0 %v1703
        %1783 = vmatmul.bf16.gmra.mxu0 %v1773
        %v1784 = vpop.f32.mrf.mxu0
        %v1785 = vadd.f32 0.0, %v1784
        %v1786 = vpop.f32.mrf.mxu0
        %1787 = vdwg.mxu0
        %v1789 = vsel %vm1243, %v1678, 0
        %1791 = vmatpush.bf16.msra.mxu0 0
        %1792 = vmatpush.bf16.msra.mxu0 0
        %1793 = vmatpush.bf16.msra.mxu0 0
        %1794 = vmatpush.bf16.msra.mxu0 0
        %1795 = vmatpush.bf16.msra.mxu0 0
        %1796 = vmatpush.bf16.msra.mxu0 0
        %1797 = vmatpush.bf16.msra.mxu0 0
        %1798 = vmatpush.bf16.msra.mxu0 %v1722
        %1799 = vmatmul.bf16.gmra.mxu0 %v1789
        %v1800 = vpop.f32.mrf.mxu0
        %v1801 = vadd.f32 0.0, %v1800
        %v1802 = vpop.f32.mrf.mxu0
        %1803 = vdwg.mxu0
        %v1805 = vsel %vm1243, %v1679, 0
        %1807 = vmatpush.bf16.msra.mxu0 0
        %1808 = vmatpush.bf16.msra.mxu0 0
        %1809 = vmatpush.bf16.msra.mxu0 0
        %1810 = vmatpush.bf16.msra.mxu0 0
        %1811 = vmatpush.bf16.msra.mxu0 0
        %1812 = vmatpush.bf16.msra.mxu0 0
        %1813 = vmatpush.bf16.msra.mxu0 0
        %1814 = vmatpush.bf16.msra.mxu0 %v1741
        %1815 = vmatmul.bf16.gmra.mxu0 %v1805
        %v1816 = vpop.f32.mrf.mxu0
        %v1817 = vadd.f32 0.0, %v1816
        %v1818 = vpop.f32.mrf.mxu0
        %1819 = vdwg.mxu0
        %v1820 = vsel %vm706, %v1696, 0.0
        %v1821 = vsel %vm706, %v1715, 0.0
        %v1822 = vadd.f32 %v1820, %v1821
        %v1823 = vsel %vm706, %v1734, 0.0
        %v1824 = vadd.f32 %v1822, %v1823
        %v1825 = vsel %vm706, %v1753, 0.0
        %v1826 = vadd.f32 %v1824, %v1825
        %v1827 = vsel %vm706, %v1769, 0.0
        %v1828 = vsel %vm706, %v1785, 0.0
        %v1829 = vadd.f32 %v1827, %v1828
        %v1830 = vsel %vm706, %v1801, 0.0
        %v1831 = vadd.f32 %v1829, %v1830
        %v1832 = vsel %vm706, %v1817, 0.0
        %v1833 = vadd.f32 %v1831, %v1832
        %v1834 = vld [vmem:[%s603] sm:$0x1]
        %v1836 = vperm.slane %v1834, 0
        %v1838 = vadd.f32 %v1826, %v1836
        %v1839 = vadd.f32 %v1833, %v1836
        %v1840 = vadd.f32 %v1838, %v642
        %v1841 = vadd.f32 %v1839, %v643
        %v1842 = vld [vmem:[%s606] sm:$0x1]
        %v1843 = vld [vmem:[%s609] sm:$0x1]
        %v1844 = vsel %vm706, %v1840, 0.0
        %1845 = vadd.xlane.f32.xlu0 %v1844
        %v1846 = vpop.xlane.xlu0 %1845
        %v1847 = vsel %vm706, %v1841, 0.0
        %1848 = vadd.xlane.f32.xlu0 %v1847
        %v1849 = vpop.xlane.xlu0 %1848
        %v1850 = vrcp.pop 32.0
        %v1851 = vmul.f32 32.0, %v1850
        %v1852 = vsub.f32 1.0, %v1851
        %v1853 = vmul.f32 %v1850, %v1852
        %v1854 = vadd.f32 %v1850, %v1853
        %vm1855 = vweird.f32 %v1850
        %v1856 = vsel %vm1855, %v1850, %v1854
        %v1857 = vmul.f32 %v1846, %v1856
        %v1858 = vmul.f32 %v1849, %v1856
        %v1859 = vsub.f32 %v1840, %v1857
        %v1860 = vsub.f32 %v1841, %v1858
        %v1861 = vmul.f32 %v1859, %v1859
        %v1862 = vmul.f32 %v1860, %v1860
        %v1863 = vsel %vm706, %v1861, 0.0
        %1864 = vadd.xlane.f32.xlu0 %v1863
        %v1865 = vpop.xlane.xlu0 %1864
        %v1866 = vsel %vm706, %v1862, 0.0
        %1867 = vadd.xlane.f32.xlu0 %v1866
        %v1868 = vpop.xlane.xlu0 %1867
        %v1869 = vmul.f32 %v1865, %v1856
        %v1870 = vmul.f32 %v1868, %v1856
        %v1871 = vadd.f32 %v1869, 1e-10
        %v1872 = vadd.f32 %v1870, 1e-10
        %v1873 = vrsqrt.pop %v1871
        %v1874 = vmul.f32 %v1873, %v1871
        %v1875 = vmul.f32 %v1874, %v1873
        %v1876 = vmul.f32 0.5, %v1875
        %v1877 = vsub.f32 1.5, %v1876
        %v1878 = vmul.f32 %v1873, %v1877
        %vm1879 = vweird.f32 %v1871
        %vm1880 = vweird.f32 %v1873
        %vm1881 = vmor %vm1879, %vm1880
        %v1882 = vsel %vm1881, %v1873, %v1878
        %v1883 = vrsqrt.pop %v1872
        %v1884 = vmul.f32 %v1883, %v1872
        %v1885 = vmul.f32 %v1884, %v1883
        %v1886 = vmul.f32 0.5, %v1885
        %v1887 = vsub.f32 1.5, %v1886
        %v1888 = vmul.f32 %v1883, %v1887
        %vm1889 = vweird.f32 %v1872
        %vm1890 = vweird.f32 %v1883
        %vm1891 = vmor %vm1889, %vm1890
        %v1892 = vsel %vm1891, %v1883, %v1888
        %v1893 = vmul.f32 %v1859, %v1882
        %v1894 = vmul.f32 %v1860, %v1892
        %v1896 = vperm.slane %v1842, 0
        %v1898 = vmul.f32 %v1896, %v1893
        %v1899 = vmul.f32 %v1896, %v1894
        %v1901 = vperm.slane %v1843, 0
        %v1903 = vadd.f32 %v1898, %v1901
        %v1904 = vadd.f32 %v1899, %v1901
        %v1905 = vpack.c.bf16 %v1904, %v1903
        %v1906 = vld [vmem:[%s614] sm:$0xf]
        %v1907 = vld [vmem:[%s614 + $0x4] sm:$0xf]
        %v1908 = vld [vmem:[%s614 + $0x8] sm:$0xf]
        %v1909 = vld [vmem:[%s614 + $0xc] sm:$0xf]
        %v1910 = vld [vmem:[%s617] sm:$0x1]
        %v1912 = vperm.slane %v1910, 0
        %v1918 = vunpack.c.l.b16 %v1906
        %v1919 = vunpack.c.l.b16 %v1907
        %v1920 = vunpack.c.l.b16 %v1908
        %v1921 = vunpack.c.l.b16 %v1909
        %v1922 = vpack.c.b16 %v1919, %v1918
        %v1923 = vpack.c.b16 %v1921, %v1920
        %v1927 = vsel %vm706, %v1905, 0
        %1929 = vmatpush.bf16.msra.mxu0 0
        %1930 = vmatpush.bf16.msra.mxu0 0
        %1931 = vmatpush.bf16.msra.mxu0 0
        %1932 = vmatpush.bf16.msra.mxu0 0
        %1933 = vmatpush.bf16.msra.mxu0 0
        %1934 = vmatpush.bf16.msra.mxu0 0
        %1935 = vmatpush.bf16.msra.mxu0 %v1923
        %1936 = vmatpush.bf16.msra.mxu0 %v1922
        %1937 = vmatmul.bf16.gmra.mxu0 %v1927
        %v1938 = vpop.f32.mrf.mxu0
        %v1939 = vadd.f32 %v1912, %v1938
        %v1940 = vpop.f32.mrf.mxu0
        %v1941 = vadd.f32 %v1912, %v1940
        %1942 = vdwg.mxu0
        %v1943 = vmax.f32 %v1939, 0.0
        %v1944 = vmax.f32 %v1941, 0.0
        %v1945 = vpack.c.bf16 %v1944, %v1943
        %v1946 = vld [vmem:[%s622] sm:$0xf]
        %v1947 = vld [vmem:[%s622 + $0x4] sm:$0xf]
        %v1948 = vld [vmem:[%s622 + $0x8] sm:$0xf]
        %v1949 = vld [vmem:[%s622 + $0xc] sm:$0xf]
        %v1950 = vld [vmem:[%s622 + $0x10] sm:$0xf]
        %v1951 = vld [vmem:[%s622 + $0x14] sm:$0xf]
        %v1952 = vld [vmem:[%s622 + $0x18] sm:$0xf]
        %v1953 = vld [vmem:[%s622 + $0x1c] sm:$0xf]
        %v1954 = vld [vmem:[%s625] sm:$0x1]
        %v1956 = vperm.slane %v1954, 0
        %v1966 = vunpack.c.l.b16 %v1946
        %v1967 = vunpack.c.l.b16 %v1947
        %v1968 = vunpack.c.l.b16 %v1948
        %v1969 = vunpack.c.l.b16 %v1949
        %v1970 = vunpack.c.l.b16 %v1950
        %v1971 = vunpack.c.l.b16 %v1951
        %v1972 = vunpack.c.l.b16 %v1952
        %v1973 = vunpack.c.l.b16 %v1953
        %v1974 = vpack.c.b16 %v1967, %v1966
        %v1975 = vpack.c.b16 %v1969, %v1968
        %v1976 = vpack.c.b16 %v1971, %v1970
        %v1977 = vpack.c.b16 %v1973, %v1972
        %vm1982 = vcmask 523264
        %v1984 = vsel %vm1982, %v1945, 0
        %1986 = vmatpush.bf16.msra.mxu0 0
        %1987 = vmatpush.bf16.msra.mxu0 0
        %1988 = vmatpush.bf16.msra.mxu0 0
        %1989 = vmatpush.bf16.msra.mxu0 0
        %1990 = vmatpush.bf16.msra.mxu0 %v1977
        %1991 = vmatpush.bf16.msra.mxu0 %v1976
        %1992 = vmatpush.bf16.msra.mxu0 %v1975
        %1993 = vmatpush.bf16.msra.mxu0 %v1974
        %1994 = vmatmul.bf16.gmra.mxu0 %v1984
        %v1995 = vpop.f32.mrf.mxu0
        %v1996 = vadd.f32 %v1956, %v1995
        %v1997 = vpop.f32.mrf.mxu0
        %v1998 = vadd.f32 %v1956, %v1997
        %1999 = vdwg.mxu0
        %v2000 = vadd.f32 %v1996, %v1903
        %v2001 = vadd.f32 %v1998, %v1904
        %v2002 = vld [vmem:[%s628] sm:$0x1]
        %v2003 = vld [vmem:[%s631] sm:$0x1]
        %v2004 = vsel %vm706, %v2000, 0.0
        %2005 = vadd.xlane.f32.xlu0 %v2004
        %v2006 = vpop.xlane.xlu0 %2005
        %v2007 = vsel %vm706, %v2001, 0.0
        %2008 = vadd.xlane.f32.xlu0 %v2007
        %v2009 = vpop.xlane.xlu0 %2008
        %v2010 = vmul.f32 %v2006, %v1856
        %v2011 = vmul.f32 %v2009, %v1856
        %v2012 = vsub.f32 %v2000, %v2010
        %v2013 = vsub.f32 %v2001, %v2011
        %v2014 = vmul.f32 %v2012, %v2012
        %v2015 = vmul.f32 %v2013, %v2013
        %v2016 = vsel %vm706, %v2014, 0.0
        %2017 = vadd.xlane.f32.xlu0 %v2016
        %v2018 = vpop.xlane.xlu0 %2017
        %v2019 = vsel %vm706, %v2015, 0.0
        %2020 = vadd.xlane.f32.xlu0 %v2019
        %v2021 = vpop.xlane.xlu0 %2020
        %v2022 = vmul.f32 %v2018, %v1856
        %v2023 = vmul.f32 %v2021, %v1856
        %v2024 = vadd.f32 %v2022, 1e-10
        %v2025 = vadd.f32 %v2023, 1e-10
        %v2026 = vrsqrt.pop %v2024
        %v2027 = vmul.f32 %v2026, %v2024
        %v2028 = vmul.f32 %v2027, %v2026
        %v2029 = vmul.f32 0.5, %v2028
        %v2030 = vsub.f32 1.5, %v2029
        %v2031 = vmul.f32 %v2026, %v2030
        %vm2032 = vweird.f32 %v2024
        %vm2033 = vweird.f32 %v2026
        %vm2034 = vmor %vm2032, %vm2033
        %v2035 = vsel %vm2034, %v2026, %v2031
        %v2036 = vrsqrt.pop %v2025
        %v2037 = vmul.f32 %v2036, %v2025
        %v2038 = vmul.f32 %v2037, %v2036
        %v2039 = vmul.f32 0.5, %v2038
        %v2040 = vsub.f32 1.5, %v2039
        %v2041 = vmul.f32 %v2036, %v2040
        %vm2042 = vweird.f32 %v2025
        %vm2043 = vweird.f32 %v2036
        %vm2044 = vmor %vm2042, %vm2043
        %v2045 = vsel %vm2044, %v2036, %v2041
        %v2046 = vmul.f32 %v2012, %v2035
        %v2047 = vmul.f32 %v2013, %v2045
        %v2049 = vperm.slane %v2002, 0
        %v2051 = vmul.f32 %v2049, %v2046
        %v2052 = vmul.f32 %v2049, %v2047
        %v2054 = vperm.slane %v2003, 0
        %v2056 = vadd.f32 %v2051, %v2054
        %v2057 = vadd.f32 %v2052, %v2054
        %2058 = vst.msk [vmem:[#allocation2] sm:$0xff] %vm706, %v2056
        %2059 = vst.msk [vmem:[#allocation2 + $0x8] sm:$0xff] %vm706, %v2057
        // Predicated region
        $region81: #{tpu_custom_call.1} parent=75 // pred_check
          %p2060 = pneg %p393
        $region82: #{tpu_custom_call.1} parent=75 // pred_check_branch
          %2062 = sbr.rel (%p2060) target = $region84
        $region83: #{tpu_custom_call.1} parent=75 // pred_region
          %2064 = vsyncadd [#allocation3], 0
          %s2065 = sshll.u32 [#allocation2], 4
          %s2066 = int_to_ptr.vmem [resolvable:$true] %s2065
          %s2067 = sshll.u32 %s14, 4
          %s2068 = int_to_ptr.hbm [resolvable:$true] %s2067
          %2073 = dma.vmem_to_hbm [thread:$0]  %s2066, 256, %s2068, [#allocation3], 128, 128, 8
        $region84: #{tpu_custom_call.1} parent=75 // pred_fallthru
          _
        // Predicated region
        $region85: #{tpu_custom_call.1} parent=75 // pred_check
          %p2074 = pneg %p393
        $region86: #{tpu_custom_call.1} parent=75 // pred_check_branch
          %2076 = sbr.rel (%p2074) target = $region88
        $region87: #{tpu_custom_call.1} parent=75 // pred_region
          %2078 = dma.done [#allocation3], 256
        $region88: #{tpu_custom_call.1} parent=75 // pred_fallthru
          _
      $region76: #{tpu_custom_call.1} parent=5 // pred_fallthru
        _
      %p2079 = scmp.le.s32.totalorder 2, %s21
      // Predicated region
      $region89: #{tpu_custom_call.1} parent=5 // pred_check
        %p2080 = pneg %p2079
      $region90: #{tpu_custom_call.1} parent=5 // pred_check_branch
        %2082 = sbr.rel (%p2080) target = $region92
      $region91: #{tpu_custom_call.1} parent=5 // pred_region
        %s2083 = ssub.s32 %s21, 2
      $region92: #{tpu_custom_call.1} parent=5 // pred_fallthru
        _
    $region6: #{tpu_custom_call.1} parent=1 // loop_footer
      %s25 = sadd.s32 1, %s21
    $region7: #{tpu_custom_call.1} parent=1 // loop_footer_branch
      %20 = sbr.rel target = $region3
    $region8: #{tpu_custom_call.1} parent=1 // loop_exit
      _
    %2084 = vsyncpa [#allocation3], 1
    %s2085 = scalar_lea.sflag [#allocation3], 1
    %2086 = vsyncpa %s2085, 1

</llo_original>
